<compile_context>
chip_gen: v5e
topology: v5e:2x2
jax: 0.10.0
libtpu: 0.0.40
codegen_flags: <defaults>
</compile_context>

<pallas_src>
import functools

import jax
import jax.numpy as jnp
from jax.experimental import pallas as pl
from jax.experimental.pallas import tpu as pltpu


_BN_EPS = 1e-3
_LANE = 128


def _round_up(x, m):
    return (x + m - 1) // m * m


def _ceil_div(a, b):
    return -(-a // b)


def _pick_row_tile(ho, wo, target_m=512):
    """Largest divisor of Ho such that tho*Wo <= target_m (exact tiling)."""
    cap = max(1, target_m // max(wo, 1))
    best = 1
    for d in range(1, ho + 1):
        if ho % d == 0 and d <= cap:
            best = d
    return best


# ----------------------------------------------------------------------------
# Pallas kernel: stride-1 direct conv as ONE matmul per tile (+ bias, + ReLU)
# ----------------------------------------------------------------------------
def _make_conv_kernel(*, k_eff, cin_eff, wo, tho, cout_pad, relu):
    """Refs:
      x_ref: (Hc, Wc, cin_eff)        bf16 padded (and s2d-packed) input image
      w_ref: (K, cout_pad)            bf16 weights, K = k_eff*k_eff*cin_eff,
                                      BN scale folded, contraction order (kh,kw,c)
      b_ref: (1, cout_pad)            f32 folded BN bias
      o_ref: (tho*wo, cout_pad)       bf16 flattened output rows of this tile
    """
    K = k_eff * k_eff * cin_eff
    M = tho * wo

    def kernel(x_ref, w_ref, b_ref, o_ref):
        hb = pl.program_id(1)
        r0 = hb * tho                      # first output row of this tile (s == 1)

        # Build the (M, K) lhs: concat k*k shifted windows along the
        # contraction (lane) axis — taps folded into K, rows folded into M.
        pieces = []
        for kh in range(k_eff):
            rows = x_ref[pl.ds(r0 + kh, tho), :, :]        # (tho, Wc, cin_eff)
            for kw in range(k_eff):
                pieces.append(rows[:, kw:kw + wo, :])      # (tho, wo, cin_eff)
        lhs = jnp.concatenate(pieces, axis=-1) if len(pieces) > 1 else pieces[0]
        lhs = lhs.reshape(M, K)                            # (tho*wo, K) bf16

        acc = jnp.dot(lhs, w_ref[...],
                      preferred_element_type=jnp.float32)  # (M, cout_pad) f32
        y = acc + b_ref[...]                               # bias hoisted, once
        if relu:
            y = jnp.maximum(y, 0.0)
        o_ref[...] = y.astype(o_ref.dtype)                 # bf16 store

    return kernel


# ----------------------------------------------------------------------------
# Wrapper: NCHW in / NCHW out, matches PyTorch Conv(=conv+BN+act) semantics
# ----------------------------------------------------------------------------
@functools.partial(jax.jit, static_argnames=("cout", "k", "s", "p", "relu"))
def conv_bn_act(x_nchw, w_packed, bias_pad, *, cout, k, s, p, relu=True):
    """x_nchw: (N, Cin, H, W) f32 -> (N, Cout, Ho, Wo) f32."""
    N, Cin, H, W = x_nchw.shape
    cout_pad = w_packed.shape[-1]
    Ho = (H + 2 * p - k) // s + 1
    Wo = (W + 2 * p - k) // s + 1

    # NHWC, zero spatial pad, space-to-depth for strided convs, bf16 operands.
    x = jnp.transpose(x_nchw, (0, 2, 3, 1))
    xp = jnp.pad(x, ((0, 0), (p, p), (p, p), (0, 0)))
    if s > 1:
        Hp, Wp = H + 2 * p, W + 2 * p
        Hc, Wc = _ceil_div(Hp, s), _ceil_div(Wp, s)
        xp = jnp.pad(xp, ((0, 0), (0, Hc * s - Hp), (0, Wc * s - Wp), (0, 0)))
        xp = xp.reshape(N, Hc, s, Wc, s, Cin)
        xp = xp.transpose(0, 1, 3, 2, 4, 5).reshape(N, Hc, Wc, s * s * Cin)
        k_eff, cin_eff = _ceil_div(k, s), s * s * Cin
    else:
        Hc, Wc = H + 2 * p, W + 2 * p
        k_eff, cin_eff = k, Cin
    xp = xp.astype(jnp.bfloat16)

    K = k_eff * k_eff * cin_eff
    assert w_packed.shape == (K, cout_pad), (w_packed.shape, (K, cout_pad))

    tho = _pick_row_tile(Ho, Wo)          # exact tiling, M = tho*Wo
    nhb = Ho // tho
    grid = (N, nhb)

    kernel = _make_conv_kernel(k_eff=k_eff, cin_eff=cin_eff, wo=Wo, tho=tho,
                               cout_pad=cout_pad, relu=relu)

    flops = 2 * N * Ho * Wo * K * cout_pad
    bytes_accessed = (xp.size * 2 + w_packed.size * 2 + bias_pad.size * 4
                      + N * Ho * Wo * cout_pad * 2)

    out = pl.pallas_call(
        kernel,
        out_shape=jax.ShapeDtypeStruct((N, Ho * Wo, cout_pad), jnp.bfloat16),
        grid=grid,
        in_specs=[
            pl.BlockSpec((None, Hc, Wc, cin_eff), lambda n, hb: (n, 0, 0, 0)),
            pl.BlockSpec((K, cout_pad), lambda n, hb: (0, 0)),
            pl.BlockSpec((1, cout_pad), lambda n, hb: (0, 0)),
        ],
        out_specs=pl.BlockSpec((None, tho * Wo, cout_pad),
                               lambda n, hb: (n, hb, 0)),
        compiler_params=pltpu.CompilerParams(
            dimension_semantics=("parallel", "parallel"),
            vmem_limit_bytes=48 * 1024 * 1024),
        cost_estimate=pl.CostEstimate(flops=flops, transcendentals=0,
                                      bytes_accessed=bytes_accessed),
    )(xp, w_packed, bias_pad)

    out = out[:, :, :cout].reshape(N, Ho, Wo, cout)       # drop lane padding
    return jnp.transpose(out, (0, 3, 1, 2)).astype(jnp.float32)


# ----------------------------------------------------------------------------
# Parameter init + folding/packing (BN scale into weights, s2d remap, Cout pad)
# ----------------------------------------------------------------------------
def init_conv_bn_params(key, cin, cout, k):
    k1, k2, k3 = jax.random.split(key, 3)
    fan_in = cin * k * k
    w = jax.random.normal(k1, (k, k, cin, cout), jnp.float32) / jnp.sqrt(fan_in)
    gamma = 1.0 + 0.1 * jax.random.normal(k2, (cout,), jnp.float32)
    beta = 0.1 * jax.random.normal(k3, (cout,), jnp.float32)
    running_mean = jnp.zeros((cout,), jnp.float32)   # fresh-module eval stats
    running_var = jnp.ones((cout,), jnp.float32)
    return w, gamma, beta, running_mean, running_var


def fold_and_pack_params(w, gamma, beta, mean, var, *, k, s):
    cin, cout = w.shape[2], w.shape[3]
    scale = gamma / jnp.sqrt(var + _BN_EPS)
    bias = beta - mean * scale
    wf = w * scale[None, None, None, :]
    if s > 1:                                   # space-to-depth weight remap
        kc = _ceil_div(k, s)
        wpad = jnp.zeros((kc * s, kc * s, cin, cout), jnp.float32)
        wpad = wpad.at[:k, :k].set(wf)
        wf = wpad.reshape(kc, s, kc, s, cin, cout).transpose(0, 2, 1, 3, 4, 5)
        k_eff, cin_eff = kc, s * s * cin
    else:
        k_eff, cin_eff = k, cin
    K = k_eff * k_eff * cin_eff
    cout_pad = _round_up(cout, _LANE)
    w_packed = jnp.zeros((K, cout_pad), jnp.float32)
    w_packed = w_packed.at[:, :cout].set(wf.reshape(K, cout))
    bias_pad = jnp.zeros((1, cout_pad), jnp.float32).at[0, :cout].set(bias)
    return w_packed.astype(jnp.bfloat16), bias_pad


# ----------------------------------------------------------------------------
# Pure-JAX reference (same bf16 rounding of operands, f32 accumulation)
# ----------------------------------------------------------------------------
def conv_bn_act_reference(x_nchw, w, gamma, beta, mean, var, *, k, s, p,
                          relu=True):
    N, Cin, H, W = x_nchw.shape
    cout = w.shape[-1]
    Ho = (H + 2 * p - k) // s + 1
    Wo = (W + 2 * p - k) // s + 1
    scale = gamma / jnp.sqrt(var + _BN_EPS)
    bias = beta - mean * scale
    wf = (w * scale[None, None, None, :]).astype(jnp.bfloat16).astype(jnp.float32)
    x = jnp.transpose(x_nchw, (0, 2, 3, 1))
    xp = jnp.pad(x, ((0, 0), (p, p), (p, p), (0, 0)))
    xp = xp.astype(jnp.bfloat16).astype(jnp.float32)

    acc = jnp.zeros((N, Ho, Wo, cout), jnp.float32)
    for kh in range(k):
        for kw in range(k):
            win = xp[:, kh:kh + s * (Ho - 1) + 1:s,
                     kw:kw + s * (Wo - 1) + 1:s, :]
            acc = acc + jnp.einsum("nhwc,cd->nhwd", win, wf[kh, kw],
                                   precision="highest")
    y = acc + bias
    if relu:
        y = jnp.maximum(y, 0.0)
    return jnp.transpose(y, (0, 3, 1, 2))


# ----------------------------------------------------------------------------
# Main
# ----------------------------------------------------------------------------
if __name__ == "__main__":
    key = jax.random.PRNGKey(0)
    kx, kp1, kp2, kp3 = jax.random.split(key, 4)

    # Input matching the module usage: NCHW, batch=2, channels=4, spatial=16.
    x = jax.random.normal(kx, (2, 4, 16, 16), jnp.float32)

    configs = [
        # Conv(4, 8, ReLU(), k=3, s=1, p=1)
        dict(key=kp1, cin=4, cout=8, k=3, s=1, p=1, relu=True),
        # Conv(4, 16, ReLU(), k=7, s=2, p=3)  -> space-to-depth path
        dict(key=kp2, cin=4, cout=16, k=7, s=2, p=3, relu=True),
        # Conv(4, 8, Identity(), k=1, s=1, p=0) -> 1x1 conv, no activation
        dict(key=kp3, cin=4, cout=8, k=1, s=1, p=0, relu=False),
    ]

    for cfg in configs:
        w, gamma, beta, mean, var = init_conv_bn_params(
            cfg["key"], cfg["cin"], cfg["cout"], cfg["k"])
        w_packed, bias_pad = fold_and_pack_params(
            w, gamma, beta, mean, var, k=cfg["k"], s=cfg["s"])

        out = conv_bn_act(x, w_packed, bias_pad, cout=cfg["cout"], k=cfg["k"],
                          s=cfg["s"], p=cfg["p"], relu=cfg["relu"])
        out = jax.block_until_ready(out)

        H = x.shape[2]
        Ho = (H + 2 * cfg["p"] - cfg["k"]) // cfg["s"] + 1
        expected = (x.shape[0], cfg["cout"], Ho, Ho)
        assert out.shape == expected, (out.shape, expected)
        assert bool(jnp.all(jnp.isfinite(out)))

        ref = conv_bn_act_reference(x, w, gamma, beta, mean, var, k=cfg["k"],
                                    s=cfg["s"], p=cfg["p"], relu=cfg["relu"])
        # Kernel stores bf16 output (review item); allow ~1 bf16 ulp at |y|~4-8.
        err = float(jnp.max(jnp.abs(out - ref)))
        assert err <= 5e-2, f"max abs error {err}"

    print("KERNEL_OK")
</pallas_src>

<mosaic_0001>
module attributes {stable_mosaic.version = 11 : i64} {
  func.func @kernel(%arg0: i32, %arg1: i32, %arg2: memref<1x18x18x4xbf16, #tpu.memory_space<vmem>>, %arg3: memref<36x128xbf16, #tpu.memory_space<vmem>>, %arg4: memref<1x128xf32, #tpu.memory_space<vmem>>, %arg5: memref<1x256x128xbf16, #tpu.memory_space<vmem>>) attributes {dimension_semantics = [#tpu.dimension_semantics<parallel>, #tpu.dimension_semantics<parallel>], iteration_bounds = array<i64: 2, 1>, scalar_prefetch = 0 : i64, scratch_operands = 0 : i64, tpu.core_type = #tpu.core_type<tc>, window_params = [{transform_indices = @transform_0, window_bounds = array<i64: 1, 18, 18, 4>}, {pipeline_mode = #tpu.pipeline_mode<synchronous>, transform_indices = @transform_1, window_bounds = array<i64: 36, 128>}, {pipeline_mode = #tpu.pipeline_mode<synchronous>, transform_indices = @transform_2, window_bounds = array<i64: 1, 128>}, {transform_indices = @transform_3, window_bounds = array<i64: 1, 256, 128>}]} {
    %c16_i32 = arith.constant 16 : i32
    %0 = arith.muli %arg1, %c16_i32 : i32
    %c0_i32 = arith.constant 0 : i32
    %1 = arith.addi %0, %c0_i32 : i32
    %c0 = arith.constant 0 : index
    %2 = arith.index_cast %1 : i32 to index
    %c0_0 = arith.constant 0 : index
    %c0_1 = arith.constant 0 : index
    %3 = vector.load %arg2[%c0, %2, %c0_0, %c0_1] : memref<1x18x18x4xbf16, #tpu.memory_space<vmem>>, vector<1x16x18x4xbf16>
    %4 = vector.shape_cast %3 : vector<1x16x18x4xbf16> to vector<16x18x4xbf16>
    %5 = vector.extract_strided_slice %4 {offsets = [0, 0, 0], sizes = [16, 16, 4], strides = [1, 1, 1]} : vector<16x18x4xbf16> to vector<16x16x4xbf16>
    %6 = vector.extract_strided_slice %4 {offsets = [0, 1, 0], sizes = [16, 16, 4], strides = [1, 1, 1]} : vector<16x18x4xbf16> to vector<16x16x4xbf16>
    %7 = vector.extract_strided_slice %4 {offsets = [0, 2, 0], sizes = [16, 16, 4], strides = [1, 1, 1]} : vector<16x18x4xbf16> to vector<16x16x4xbf16>
    %c1_i32 = arith.constant 1 : i32
    %8 = arith.addi %0, %c1_i32 : i32
    %c0_2 = arith.constant 0 : index
    %9 = arith.index_cast %8 : i32 to index
    %c0_3 = arith.constant 0 : index
    %c0_4 = arith.constant 0 : index
    %10 = vector.load %arg2[%c0_2, %9, %c0_3, %c0_4] : memref<1x18x18x4xbf16, #tpu.memory_space<vmem>>, vector<1x16x18x4xbf16>
    %11 = vector.shape_cast %10 : vector<1x16x18x4xbf16> to vector<16x18x4xbf16>
    %12 = vector.extract_strided_slice %11 {offsets = [0, 0, 0], sizes = [16, 16, 4], strides = [1, 1, 1]} : vector<16x18x4xbf16> to vector<16x16x4xbf16>
    %13 = vector.extract_strided_slice %11 {offsets = [0, 1, 0], sizes = [16, 16, 4], strides = [1, 1, 1]} : vector<16x18x4xbf16> to vector<16x16x4xbf16>
    %14 = vector.extract_strided_slice %11 {offsets = [0, 2, 0], sizes = [16, 16, 4], strides = [1, 1, 1]} : vector<16x18x4xbf16> to vector<16x16x4xbf16>
    %c2_i32 = arith.constant 2 : i32
    %15 = arith.addi %0, %c2_i32 : i32
    %c0_5 = arith.constant 0 : index
    %16 = arith.index_cast %15 : i32 to index
    %c0_6 = arith.constant 0 : index
    %c0_7 = arith.constant 0 : index
    %17 = vector.load %arg2[%c0_5, %16, %c0_6, %c0_7] : memref<1x18x18x4xbf16, #tpu.memory_space<vmem>>, vector<1x16x18x4xbf16>
    %18 = vector.shape_cast %17 : vector<1x16x18x4xbf16> to vector<16x18x4xbf16>
    %19 = vector.extract_strided_slice %18 {offsets = [0, 0, 0], sizes = [16, 16, 4], strides = [1, 1, 1]} : vector<16x18x4xbf16> to vector<16x16x4xbf16>
    %20 = vector.extract_strided_slice %18 {offsets = [0, 1, 0], sizes = [16, 16, 4], strides = [1, 1, 1]} : vector<16x18x4xbf16> to vector<16x16x4xbf16>
    %21 = vector.extract_strided_slice %18 {offsets = [0, 2, 0], sizes = [16, 16, 4], strides = [1, 1, 1]} : vector<16x18x4xbf16> to vector<16x16x4xbf16>
    %22 = tpu.concatenate %5, %6, %7, %12, %13, %14, %19, %20, %21 in 2 : vector<16x16x4xbf16>, vector<16x16x4xbf16>, vector<16x16x4xbf16>, vector<16x16x4xbf16>, vector<16x16x4xbf16>, vector<16x16x4xbf16>, vector<16x16x4xbf16>, vector<16x16x4xbf16>, vector<16x16x4xbf16> -> vector<16x16x36xbf16>
    %23 = vector.shape_cast %22 : vector<16x16x36xbf16> to vector<256x36xbf16>
    %c0_8 = arith.constant 0 : index
    %c0_9 = arith.constant 0 : index
    %24 = vector.load %arg3[%c0_8, %c0_9] : memref<36x128xbf16, #tpu.memory_space<vmem>>, vector<36x128xbf16>
    %cst = arith.constant dense<0.000000e+00> : vector<256x128xf32>
    %25 = tpu.matmul %23, %24, %cst {dimension_numbers = #tpu.dot_dimension_numbers<[1], [0], [0], [1], [0, 0, 1, 1], [], []>} : vector<256x36xbf16>, vector<36x128xbf16>, vector<256x128xf32> -> vector<256x128xf32>
    %c0_10 = arith.constant 0 : index
    %c0_11 = arith.constant 0 : index
    %26 = vector.load %arg4[%c0_10, %c0_11] : memref<1x128xf32, #tpu.memory_space<vmem>>, vector<1x128xf32>
    %27 = vector.broadcast %26 : vector<1x128xf32> to vector<256x128xf32>
    %28 = arith.addf %25, %27 : vector<256x128xf32>
    %cst_12 = arith.constant 0.000000e+00 : f32
    %29 = vector.broadcast %cst_12 : f32 to vector<256x128xf32>
    %30 = arith.maximumf %28, %29 : vector<256x128xf32>
    %31 = arith.truncf %30 : vector<256x128xf32> to vector<256x128xbf16>
    %c0_13 = arith.constant 0 : index
    %c0_14 = arith.constant 0 : index
    %c0_15 = arith.constant 0 : index
    %32 = vector.load %arg5[%c0_13, %c0_14, %c0_15] : memref<1x256x128xbf16, #tpu.memory_space<vmem>>, vector<1x256x128xbf16>
    %33 = vector.shape_cast %32 : vector<1x256x128xbf16> to vector<256x128xbf16>
    %34 = vector.shape_cast %31 : vector<256x128xbf16> to vector<1x256x128xbf16>
    tpu.vector_store %arg5[%c0_13, %c0_14, %c0_15], %34 {strides = array<i32>} : memref<1x256x128xbf16, #tpu.memory_space<vmem>>, vector<1x256x128xbf16>,
    return
  }
  func.func @transform_0(%arg0: i32, %arg1: i32) -> (i32, i32, i32, i32) {
    %c0_i32 = arith.constant 0 : i32
    %c0_i32_0 = arith.constant 0 : i32
    %c0_i32_1 = arith.constant 0 : i32
    %c0_i32_2 = arith.constant 0 : i32
    return %arg0, %c0_i32, %c0_i32_0, %c0_i32_1 : i32, i32, i32, i32
  }
  func.func @transform_1(%arg0: i32, %arg1: i32) -> (i32, i32) {
    %c0_i32 = arith.constant 0 : i32
    %c0_i32_0 = arith.constant 0 : i32
    %c0_i32_1 = arith.constant 0 : i32
    return %c0_i32, %c0_i32_0 : i32, i32
  }
  func.func @transform_2(%arg0: i32, %arg1: i32) -> (i32, i32) {
    %c0_i32 = arith.constant 0 : i32
    %c0_i32_0 = arith.constant 0 : i32
    %c0_i32_1 = arith.constant 0 : i32
    return %c0_i32, %c0_i32_0 : i32, i32
  }
  func.func @transform_3(%arg0: i32, %arg1: i32) -> (i32, i32, i32) {
    %c0_i32 = arith.constant 0 : i32
    %c0_i32_0 = arith.constant 0 : i32
    return %arg0, %arg1, %c0_i32 : i32, i32, i32
  }
}

</mosaic_0001>

<llo_original>
// kernel: conv_bn_act.1
$region0: #{conv_bn_act.1}
  #allocation0 [shape = 'u32[]', space=smem, size = 0x4, offset = 0x4, fixed_abs, tag = 'smem constant byte address 0x4 - core index']
  #allocation1 [shape = 'u32[72,128]{1,0:T(1,128)}', space=vmem, size = 0x9000, scoped, tag = 'internal scratch']
  %s0 = inlined_call_operand.vmem [shape: bf16[2,18,18,4], index: 0, kind: input, shape index: {}]
  %s1 = inlined_call_operand.vmem [shape: bf16[36,128], index: 1, kind: input, shape index: {}]
  %s2 = inlined_call_operand.vmem [shape: f32[1,128], index: 2, kind: input, shape index: {}]
  %s3 = inlined_call_operand.vmem [shape: bf16[2,256,128], index: 3, kind: output, shape index: {}]
  %s4 = sld [smem:[#allocation0]]
  $region45: #{conv_bn_act.1} parent=0
    _
  %s6 = ssub.s32 1, %s4
  %s7 = scalar_select 0, %s6, %s4
  loop: start=0, step=1, limit=4
  $region2: #{conv_bn_act.1} parent=0 // loop_pre_header
    _
  $region3: #{conv_bn_act.1} parent=0 // loop_header
    %s9 = sphi 0, %s13
    %p10 = scmp.ge.s32.totalorder %s9, 4
    %s16 = sphi 0, %s28
    %s17 = sphi 0, %s24
    %s18 = sphi 0, %s16
    %s19 = sphi 0, %s17
    %s20 = sphi 0, %s18
    %s21 = sphi 0, %s19
    %s31 = sphi 0, %s33
    %s34 = sphi 0, %s31
    %s35 = sphi 0, %s34
    %s51 = sphi 0, %s35
    %s55 = sphi 0, %s55
    %s57 = sphi 0, %s55
    %s58 = sphi 0, %s57
    %s72 = sphi 0, %s58
    %s76 = sphi 0, %s76
    %s78 = sphi 0, %s76
    %s79 = sphi 0, %s78
    %s93 = sphi 0, %s79
    %s101 = sphi 0, %s103
    %s104 = sphi 0, %s101
    %s105 = sphi 0, %s104
    %s121 = sphi 0, %s105
  $region4: #{conv_bn_act.1} parent=0 // loop_header_branch
    %12 = sbr.rel (%p10) target = $region8
  $region5: #{conv_bn_act.1} parent=0 // loop_body
    %s14 = ssub.s32 %s9, 1
    %s15 = ssub.s32 %s9, 2
    %s22 = sadd.s32 1, %s17
    %p23 = scmp.ge.s32.totalorder %s22, 1
    %s24 = scalar_select %p23, 0, %s22
    %s25 = sadd.s32 1, %s16
    %s26 = scalar_select %p23, %s25, %s16
    %p27 = scmp.ge.s32.totalorder %s26, 2
    %s28 = scalar_select %p27, 0, %s26
    %s29 = ssub.s32 %s16, %s28
    %p30 = scmp.eq.s32.totalorder %s29, 0
    %s32 = sadd.s32 %s31, 1
    %s33 = scalar_select %p30, %s31, %s32
    %p36 = pneg %p30
    %p37 = scmp.eq.s32.totalorder %s9, 1
    %p38 = por %p36, %p37
    %p39 = scmp.ne.s32.totalorder %s31, %s34
    %p40 = scmp.eq.s32.totalorder %s9, 0
    %p41 = por %p39, %p40
    %p42 = scmp.ne.s32.totalorder %s31, %s34
    %p43 = scmp.eq.s32.totalorder %s14, 1
    %p44 = por %p42, %p43
    %p45 = scmp.ne.s32.totalorder %s34, %s35
    %p46 = scmp.eq.s32.totalorder %s14, 0
    %p47 = por %p45, %p46
    %p48 = scmp.ne.s32.totalorder %s34, %s35
    %p49 = scmp.eq.s32.totalorder %s15, 1
    %p50 = por %p48, %p49
    %p52 = scmp.ne.s32.totalorder %s35, %s51
    %p53 = scmp.eq.s32.totalorder %s15, 0
    %p54 = por %p52, %p53
    %s56 = sadd.s32 %s55, 1
    %p59 = scmp.eq.s32.totalorder %s9, 1
    %p60 = scmp.ne.s32.totalorder %s55, %s57
    %p61 = scmp.eq.s32.totalorder %s9, 0
    %p62 = por %p60, %p61
    %p63 = scmp.ne.s32.totalorder %s55, %s57
    %p64 = scmp.eq.s32.totalorder %s14, 1
    %p65 = por %p63, %p64
    %p66 = scmp.ne.s32.totalorder %s57, %s58
    %p67 = scmp.eq.s32.totalorder %s14, 0
    %p68 = por %p66, %p67
    %p69 = scmp.ne.s32.totalorder %s57, %s58
    %p70 = scmp.eq.s32.totalorder %s15, 1
    %p71 = por %p69, %p70
    %p73 = scmp.ne.s32.totalorder %s58, %s72
    %p74 = scmp.eq.s32.totalorder %s15, 0
    %p75 = por %p73, %p74
    %s77 = sadd.s32 %s76, 1
    %p80 = scmp.eq.s32.totalorder %s9, 1
    %p81 = scmp.ne.s32.totalorder %s76, %s78
    %p82 = scmp.eq.s32.totalorder %s9, 0
    %p83 = por %p81, %p82
    %p84 = scmp.ne.s32.totalorder %s76, %s78
    %p85 = scmp.eq.s32.totalorder %s14, 1
    %p86 = por %p84, %p85
    %p87 = scmp.ne.s32.totalorder %s78, %s79
    %p88 = scmp.eq.s32.totalorder %s14, 0
    %p89 = por %p87, %p88
    %p90 = scmp.ne.s32.totalorder %s78, %s79
    %p91 = scmp.eq.s32.totalorder %s15, 1
    %p92 = por %p90, %p91
    %p94 = scmp.ne.s32.totalorder %s79, %s93
    %p95 = scmp.eq.s32.totalorder %s15, 0
    %p96 = por %p94, %p95
    %s97 = ssub.s32 %s16, %s28
    %s98 = ssub.s32 %s17, %s24
    %s99 = sor.u32 %s97, %s98
    %p100 = scmp.eq.s32.totalorder %s99, 0
    %s102 = sadd.s32 %s101, 1
    %s103 = scalar_select %p100, %s101, %s102
    %p106 = pneg %p100
    %p107 = scmp.eq.s32.totalorder %s9, 1
    %p108 = por %p106, %p107
    %p109 = scmp.ne.s32.totalorder %s101, %s104
    %p110 = scmp.eq.s32.totalorder %s9, 0
    %p111 = por %p109, %p110
    %p112 = scmp.ne.s32.totalorder %s101, %s104
    %p113 = scmp.eq.s32.totalorder %s14, 1
    %p114 = por %p112, %p113
    %p115 = scmp.ne.s32.totalorder %s104, %s105
    %p116 = scmp.eq.s32.totalorder %s14, 0
    %p117 = por %p115, %p116
    %p118 = scmp.ne.s32.totalorder %s104, %s105
    %p119 = scmp.eq.s32.totalorder %s15, 1
    %p120 = por %p118, %p119
    %p122 = scmp.ne.s32.totalorder %s105, %s121
    %p123 = scmp.eq.s32.totalorder %s15, 0
    %p124 = por %p122, %p123
    %p125 = scmp.le.s32.totalorder 1, %s9
    %p126 = scmp.lt.s32.totalorder %s9, 3
    %p127 = pnand %p125, %p126
    %p128 = pneg %p127
    // Predicated region
    $region9: #{conv_bn_act.1} parent=5 // pred_check
      _
    $region10: #{conv_bn_act.1} parent=5 // pred_check_branch
      %130 = sbr.rel (%p127) target = $region12
    $region11: #{conv_bn_act.1} parent=5 // pred_region
      %s131 = ssub.s32 %s9, 1
      // Predicated region
      $region13: #{conv_bn_act.1} parent=11 // pred_check
        %p132 = pneg %p68
      $region14: #{conv_bn_act.1} parent=11 // pred_check_branch
        %134 = sbr.rel (%p132) target = $region16
      $region15: #{conv_bn_act.1} parent=11 // pred_region
        _
      $region16: #{conv_bn_act.1} parent=11 // pred_fallthru
        _
      // Predicated region
      $region17: #{conv_bn_act.1} parent=11 // pred_check
        %p135 = pneg %p89
      $region18: #{conv_bn_act.1} parent=11 // pred_check_branch
        %137 = sbr.rel (%p135) target = $region20
      $region19: #{conv_bn_act.1} parent=11 // pred_region
        _
      $region20: #{conv_bn_act.1} parent=11 // pred_fallthru
        _
    $region12: #{conv_bn_act.1} parent=5 // pred_fallthru
      _
    %p138 = scmp.lt.s32.totalorder %s9, 2
    // Predicated region
    $region21: #{conv_bn_act.1} parent=5 // pred_check
      %p139 = pneg %p138
    $region22: #{conv_bn_act.1} parent=5 // pred_check_branch
      %141 = sbr.rel (%p139) target = $region24
    $region23: #{conv_bn_act.1} parent=5 // pred_region
      // Predicated region
      $region25: #{conv_bn_act.1} parent=23 // pred_check
        %p142 = pneg %p41
      $region26: #{conv_bn_act.1} parent=23 // pred_check_branch
        %144 = sbr.rel (%p142) target = $region28
      $region27: #{conv_bn_act.1} parent=23 // pred_region
        %p145 = scmp.lt.s32.totalorder %s16, 1
        %s146 = scalar_select %p145, %s16, 1
        %s147 = smul.addr %s146, 54
        %s148 = smul.addr %s147, 4
        %s149 = scalar_lea.vmem %s0, %s148
      $region28: #{conv_bn_act.1} parent=23 // pred_fallthru
        _
    $region24: #{conv_bn_act.1} parent=5 // pred_fallthru
      _
    %p150 = scmp.le.s32.totalorder 1, %s9
    %p151 = scmp.lt.s32.totalorder %s9, 3
    %p152 = pnand %p150, %p151
    %p153 = pneg %p152
    // Predicated region
    $region29: #{conv_bn_act.1} parent=5 // pred_check
      _
    $region30: #{conv_bn_act.1} parent=5 // pred_check_branch
      %155 = sbr.rel (%p152) target = $region32
    $region31: #{conv_bn_act.1} parent=5 // pred_region
      %s156 = ssub.s32 %s9, 1
      %p157 = scmp.lt.s32.totalorder %s18, 1
      %s158 = scalar_select %p157, %s18, 1
      %s159 = smul.addr %s158, 54
      %s160 = smul.addr %s159, 4
      %s161 = scalar_lea.vmem %s0, %s160
      %p162 = pneg %p47
      %p163 = pneg %p44
      %p164 = pneg %p68
      %p165 = pneg %p65
      %p166 = pneg %p89
      %p167 = pneg %p86
      %p168 = pneg %p117
      %p169 = pneg %p114
      %s170 = smul.u32 32, %s19
      %p171 = scmp.lt.s32.totalorder %s18, 1
      %s172 = scalar_select %p171, %s18, 1
      %p173 = scmp.lt.s32.totalorder %s170, 31
      %s174 = scalar_select %p173, %s170, 31
      %s175 = smul.addr %s172, 32
      %s176 = sadd.s32 %s174, %s175
      %s177 = smul.addr %s176, 4
      %s178 = scalar_lea.vmem %s3, %s177
      %p179 = scmp.lt.s32.totalorder %s18, 1
      %s180 = scalar_select %p179, %s18, 1
      %s181 = smul.addr %s180, 54
      %s182 = smul.addr %s181, 4
      %s183 = scalar_lea.vmem %s0, %s182
      %s184 = smul.u32 32, %s19
      %p185 = scmp.lt.s32.totalorder %s18, 1
      %s186 = scalar_select %p185, %s18, 1
      %p187 = scmp.lt.s32.totalorder %s184, 31
      %s188 = scalar_select %p187, %s184, 31
      %s189 = smul.addr %s186, 32
      %s190 = sadd.s32 %s188, %s189
      %s191 = smul.addr %s190, 4
      %s192 = scalar_lea.vmem %s3, %s191
      %s193 = smul.u32 32, %s19
      %s195 = smul.u32 %s19, 16
      %s196 = smul.u32 %s195, 3
      %s197 = smul.addr %s196, 4
      %s198 = scalar_lea.vmem %s183, %s197
      %v199 = vld [vmem:[%s198] sm:$0xf]
      %v200 = vld [vmem:[%s198 + $0x4] sm:$0xf]
      %v201 = vld [vmem:[%s198 + $0x8] sm:$0x1]
      %v202 = vld [vmem:[%s198 + $0xc] sm:$0xf]
      %v203 = vld [vmem:[%s198 + $0x10] sm:$0xf]
      %v204 = vld [vmem:[%s198 + $0x14] sm:$0x1]
      %v205 = vld [vmem:[%s198 + $0x18] sm:$0xf]
      %v206 = vld [vmem:[%s198 + $0x1c] sm:$0xf]
      %v207 = vld [vmem:[%s198 + $0x20] sm:$0x1]
      %v208 = vld [vmem:[%s198 + $0x24] sm:$0xf]
      %v209 = vld [vmem:[%s198 + $0x28] sm:$0xf]
      %v210 = vld [vmem:[%s198 + $0x2c] sm:$0x1]
      %v211 = vld [vmem:[%s198 + $0x30] sm:$0xf]
      %v212 = vld [vmem:[%s198 + $0x34] sm:$0xf]
      %v213 = vld [vmem:[%s198 + $0x38] sm:$0x1]
      %v214 = vld [vmem:[%s198 + $0x3c] sm:$0xf]
      %v215 = vld [vmem:[%s198 + $0x40] sm:$0xf]
      %v216 = vld [vmem:[%s198 + $0x44] sm:$0x1]
      %v217 = vld [vmem:[%s198 + $0x48] sm:$0xf]
      %v218 = vld [vmem:[%s198 + $0x4c] sm:$0xf]
      %v219 = vld [vmem:[%s198 + $0x50] sm:$0x1]
      %v220 = vld [vmem:[%s198 + $0x54] sm:$0xf]
      %v221 = vld [vmem:[%s198 + $0x58] sm:$0xf]
      %v222 = vld [vmem:[%s198 + $0x5c] sm:$0x1]
      %v223 = vld [vmem:[%s198 + $0x60] sm:$0xf]
      %v224 = vld [vmem:[%s198 + $0x64] sm:$0xf]
      %v225 = vld [vmem:[%s198 + $0x68] sm:$0x1]
      %v226 = vld [vmem:[%s198 + $0x6c] sm:$0xf]
      %v227 = vld [vmem:[%s198 + $0x70] sm:$0xf]
      %v228 = vld [vmem:[%s198 + $0x74] sm:$0x1]
      %v229 = vld [vmem:[%s198 + $0x78] sm:$0xf]
      %v230 = vld [vmem:[%s198 + $0x7c] sm:$0xf]
      %v231 = vld [vmem:[%s198 + $0x80] sm:$0x1]
      %v232 = vld [vmem:[%s198 + $0x84] sm:$0xf]
      %v233 = vld [vmem:[%s198 + $0x88] sm:$0xf]
      %v234 = vld [vmem:[%s198 + $0x8c] sm:$0x1]
      %v235 = vld [vmem:[%s198 + $0x90] sm:$0xf]
      %v236 = vld [vmem:[%s198 + $0x94] sm:$0xf]
      %v237 = vld [vmem:[%s198 + $0x98] sm:$0x1]
      %v238 = vld [vmem:[%s198 + $0x9c] sm:$0xf]
      %v239 = vld [vmem:[%s198 + $0xa0] sm:$0xf]
      %v240 = vld [vmem:[%s198 + $0xa4] sm:$0x1]
      %v241 = vld [vmem:[%s198 + $0xa8] sm:$0xf]
      %v242 = vld [vmem:[%s198 + $0xac] sm:$0xf]
      %v243 = vld [vmem:[%s198 + $0xb0] sm:$0x1]
      %v244 = vld [vmem:[%s198 + $0xb4] sm:$0xf]
      %v245 = vld [vmem:[%s198 + $0xb8] sm:$0xf]
      %v246 = vld [vmem:[%s198 + $0xbc] sm:$0x1]
      %s247 = sadd.s32 %s195, 1
      %s248 = smul.u32 %s247, 3
      %s249 = smul.addr %s248, 4
      %s250 = scalar_lea.vmem %s183, %s249
      %v251 = vld [vmem:[%s250] sm:$0xf]
      %v252 = vld [vmem:[%s250 + $0x4] sm:$0xf]
      %v253 = vld [vmem:[%s250 + $0x8] sm:$0x1]
      %v254 = vld [vmem:[%s250 + $0xc] sm:$0xf]
      %v255 = vld [vmem:[%s250 + $0x10] sm:$0xf]
      %v256 = vld [vmem:[%s250 + $0x14] sm:$0x1]
      %v257 = vld [vmem:[%s250 + $0x18] sm:$0xf]
      %v258 = vld [vmem:[%s250 + $0x1c] sm:$0xf]
      %v259 = vld [vmem:[%s250 + $0x20] sm:$0x1]
      %v260 = vld [vmem:[%s250 + $0x24] sm:$0xf]
      %v261 = vld [vmem:[%s250 + $0x28] sm:$0xf]
      %v262 = vld [vmem:[%s250 + $0x2c] sm:$0x1]
      %v263 = vld [vmem:[%s250 + $0x30] sm:$0xf]
      %v264 = vld [vmem:[%s250 + $0x34] sm:$0xf]
      %v265 = vld [vmem:[%s250 + $0x38] sm:$0x1]
      %v266 = vld [vmem:[%s250 + $0x3c] sm:$0xf]
      %v267 = vld [vmem:[%s250 + $0x40] sm:$0xf]
      %v268 = vld [vmem:[%s250 + $0x44] sm:$0x1]
      %v269 = vld [vmem:[%s250 + $0x48] sm:$0xf]
      %v270 = vld [vmem:[%s250 + $0x4c] sm:$0xf]
      %v271 = vld [vmem:[%s250 + $0x50] sm:$0x1]
      %v272 = vld [vmem:[%s250 + $0x54] sm:$0xf]
      %v273 = vld [vmem:[%s250 + $0x58] sm:$0xf]
      %v274 = vld [vmem:[%s250 + $0x5c] sm:$0x1]
      %v275 = vld [vmem:[%s250 + $0x60] sm:$0xf]
      %v276 = vld [vmem:[%s250 + $0x64] sm:$0xf]
      %v277 = vld [vmem:[%s250 + $0x68] sm:$0x1]
      %v278 = vld [vmem:[%s250 + $0x6c] sm:$0xf]
      %v279 = vld [vmem:[%s250 + $0x70] sm:$0xf]
      %v280 = vld [vmem:[%s250 + $0x74] sm:$0x1]
      %v281 = vld [vmem:[%s250 + $0x78] sm:$0xf]
      %v282 = vld [vmem:[%s250 + $0x7c] sm:$0xf]
      %v283 = vld [vmem:[%s250 + $0x80] sm:$0x1]
      %v284 = vld [vmem:[%s250 + $0x84] sm:$0xf]
      %v285 = vld [vmem:[%s250 + $0x88] sm:$0xf]
      %v286 = vld [vmem:[%s250 + $0x8c] sm:$0x1]
      %v287 = vld [vmem:[%s250 + $0x90] sm:$0xf]
      %v288 = vld [vmem:[%s250 + $0x94] sm:$0xf]
      %v289 = vld [vmem:[%s250 + $0x98] sm:$0x1]
      %v290 = vld [vmem:[%s250 + $0x9c] sm:$0xf]
      %v291 = vld [vmem:[%s250 + $0xa0] sm:$0xf]
      %v292 = vld [vmem:[%s250 + $0xa4] sm:$0x1]
      %v293 = vld [vmem:[%s250 + $0xa8] sm:$0xf]
      %v294 = vld [vmem:[%s250 + $0xac] sm:$0xf]
      %v295 = vld [vmem:[%s250 + $0xb0] sm:$0x1]
      %v296 = vld [vmem:[%s250 + $0xb4] sm:$0xf]
      %v297 = vld [vmem:[%s250 + $0xb8] sm:$0xf]
      %v298 = vld [vmem:[%s250 + $0xbc] sm:$0x1]
      %s299 = sadd.s32 %s195, 2
      %s300 = smul.u32 %s299, 3
      %s301 = smul.addr %s300, 4
      %s302 = scalar_lea.vmem %s183, %s301
      %v303 = vld [vmem:[%s302] sm:$0xf]
      %v304 = vld [vmem:[%s302 + $0x4] sm:$0xf]
      %v305 = vld [vmem:[%s302 + $0x8] sm:$0x1]
      %v306 = vld [vmem:[%s302 + $0xc] sm:$0xf]
      %v307 = vld [vmem:[%s302 + $0x10] sm:$0xf]
      %v308 = vld [vmem:[%s302 + $0x14] sm:$0x1]
      %v309 = vld [vmem:[%s302 + $0x18] sm:$0xf]
      %v310 = vld [vmem:[%s302 + $0x1c] sm:$0xf]
      %v311 = vld [vmem:[%s302 + $0x20] sm:$0x1]
      %v312 = vld [vmem:[%s302 + $0x24] sm:$0xf]
      %v313 = vld [vmem:[%s302 + $0x28] sm:$0xf]
      %v314 = vld [vmem:[%s302 + $0x2c] sm:$0x1]
      %v315 = vld [vmem:[%s302 + $0x30] sm:$0xf]
      %v316 = vld [vmem:[%s302 + $0x34] sm:$0xf]
      %v317 = vld [vmem:[%s302 + $0x38] sm:$0x1]
      %v318 = vld [vmem:[%s302 + $0x3c] sm:$0xf]
      %v319 = vld [vmem:[%s302 + $0x40] sm:$0xf]
      %v320 = vld [vmem:[%s302 + $0x44] sm:$0x1]
      %v321 = vld [vmem:[%s302 + $0x48] sm:$0xf]
      %v322 = vld [vmem:[%s302 + $0x4c] sm:$0xf]
      %v323 = vld [vmem:[%s302 + $0x50] sm:$0x1]
      %v324 = vld [vmem:[%s302 + $0x54] sm:$0xf]
      %v325 = vld [vmem:[%s302 + $0x58] sm:$0xf]
      %v326 = vld [vmem:[%s302 + $0x5c] sm:$0x1]
      %v327 = vld [vmem:[%s302 + $0x60] sm:$0xf]
      %v328 = vld [vmem:[%s302 + $0x64] sm:$0xf]
      %v329 = vld [vmem:[%s302 + $0x68] sm:$0x1]
      %v330 = vld [vmem:[%s302 + $0x6c] sm:$0xf]
      %v331 = vld [vmem:[%s302 + $0x70] sm:$0xf]
      %v332 = vld [vmem:[%s302 + $0x74] sm:$0x1]
      %v333 = vld [vmem:[%s302 + $0x78] sm:$0xf]
      %v334 = vld [vmem:[%s302 + $0x7c] sm:$0xf]
      %v335 = vld [vmem:[%s302 + $0x80] sm:$0x1]
      %v336 = vld [vmem:[%s302 + $0x84] sm:$0xf]
      %v337 = vld [vmem:[%s302 + $0x88] sm:$0xf]
      %v338 = vld [vmem:[%s302 + $0x8c] sm:$0x1]
      %v339 = vld [vmem:[%s302 + $0x90] sm:$0xf]
      %v340 = vld [vmem:[%s302 + $0x94] sm:$0xf]
      %v341 = vld [vmem:[%s302 + $0x98] sm:$0x1]
      %v342 = vld [vmem:[%s302 + $0x9c] sm:$0xf]
      %v343 = vld [vmem:[%s302 + $0xa0] sm:$0xf]
      %v344 = vld [vmem:[%s302 + $0xa4] sm:$0x1]
      %v345 = vld [vmem:[%s302 + $0xa8] sm:$0xf]
      %v346 = vld [vmem:[%s302 + $0xac] sm:$0xf]
      %v347 = vld [vmem:[%s302 + $0xb0] sm:$0x1]
      %v348 = vld [vmem:[%s302 + $0xb4] sm:$0xf]
      %v349 = vld [vmem:[%s302 + $0xb8] sm:$0xf]
      %v350 = vld [vmem:[%s302 + $0xbc] sm:$0x1]
      %v383 = vunpack.c.l.b16 %v199
      %v384 = vunpack.c.l.b16 %v200
      %v385 = vunpack.c.l.b16 %v202
      %v386 = vunpack.c.l.b16 %v203
      %v387 = vunpack.c.l.b16 %v205
      %v388 = vunpack.c.l.b16 %v206
      %v389 = vunpack.c.l.b16 %v208
      %v390 = vunpack.c.l.b16 %v209
      %v391 = vunpack.c.l.b16 %v211
      %v392 = vunpack.c.l.b16 %v212
      %v393 = vunpack.c.l.b16 %v214
      %v394 = vunpack.c.l.b16 %v215
      %v395 = vunpack.c.l.b16 %v217
      %v396 = vunpack.c.l.b16 %v218
      %v397 = vunpack.c.l.b16 %v220
      %v398 = vunpack.c.l.b16 %v221
      %v399 = vunpack.c.l.b16 %v223
      %v400 = vunpack.c.l.b16 %v224
      %v401 = vunpack.c.l.b16 %v226
      %v402 = vunpack.c.l.b16 %v227
      %v403 = vunpack.c.l.b16 %v229
      %v404 = vunpack.c.l.b16 %v230
      %v405 = vunpack.c.l.b16 %v232
      %v406 = vunpack.c.l.b16 %v233
      %v407 = vunpack.c.l.b16 %v235
      %v408 = vunpack.c.l.b16 %v236
      %v409 = vunpack.c.l.b16 %v238
      %v410 = vunpack.c.l.b16 %v239
      %v411 = vunpack.c.l.b16 %v241
      %v412 = vunpack.c.l.b16 %v242
      %v413 = vunpack.c.l.b16 %v244
      %v414 = vunpack.c.l.b16 %v245
      %v415 = vpack.c.b16 %v384, %v383
      %v416 = vpack.c.b16 %v386, %v385
      %v417 = vpack.c.b16 %v388, %v387
      %v418 = vpack.c.b16 %v390, %v389
      %v419 = vpack.c.b16 %v392, %v391
      %v420 = vpack.c.b16 %v394, %v393
      %v421 = vpack.c.b16 %v396, %v395
      %v422 = vpack.c.b16 %v398, %v397
      %v423 = vpack.c.b16 %v400, %v399
      %v424 = vpack.c.b16 %v402, %v401
      %v425 = vpack.c.b16 %v404, %v403
      %v426 = vpack.c.b16 %v406, %v405
      %v427 = vpack.c.b16 %v408, %v407
      %v428 = vpack.c.b16 %v410, %v409
      %v429 = vpack.c.b16 %v412, %v411
      %v430 = vpack.c.b16 %v414, %v413
      %v447 = vunpack.c.l.b16 %v201
      %v448 = vunpack.c.l.b16 %v204
      %v449 = vunpack.c.l.b16 %v207
      %v450 = vunpack.c.l.b16 %v210
      %v451 = vunpack.c.l.b16 %v213
      %v452 = vunpack.c.l.b16 %v216
      %v453 = vunpack.c.l.b16 %v219
      %v454 = vunpack.c.l.b16 %v222
      %v455 = vunpack.c.l.b16 %v225
      %v456 = vunpack.c.l.b16 %v228
      %v457 = vunpack.c.l.b16 %v231
      %v458 = vunpack.c.l.b16 %v234
      %v459 = vunpack.c.l.b16 %v237
      %v460 = vunpack.c.l.b16 %v240
      %v461 = vunpack.c.l.b16 %v243
      %v462 = vunpack.c.l.b16 %v246
      %v463 = vpack.c.b16 %v447, %v447
      %v464 = vpack.c.b16 %v448, %v448
      %v465 = vpack.c.b16 %v449, %v449
      %v466 = vpack.c.b16 %v450, %v450
      %v467 = vpack.c.b16 %v451, %v451
      %v468 = vpack.c.b16 %v452, %v452
      %v469 = vpack.c.b16 %v453, %v453
      %v470 = vpack.c.b16 %v454, %v454
      %v471 = vpack.c.b16 %v455, %v455
      %v472 = vpack.c.b16 %v456, %v456
      %v473 = vpack.c.b16 %v457, %v457
      %v474 = vpack.c.b16 %v458, %v458
      %v475 = vpack.c.b16 %v459, %v459
      %v476 = vpack.c.b16 %v460, %v460
      %v477 = vpack.c.b16 %v461, %v461
      %v478 = vpack.c.b16 %v462, %v462
      %vm479 = vsmask.f32 7424
      %v481 = vshrl.u32 %v415, 16
      %v483 = vshll.u32 %v415, 16
      %v485 = vrot.slane %v483, 1
      %v486 = vor.u32 %v481, %v485
      %v488 = vshll.u32 %v463, 16
      %v490 = vrot.slane %v488, 1
      %v491 = vsel %vm479, %v486, %v490
      %v493 = vshrl.u32 %v416, 16
      %v495 = vshll.u32 %v416, 16
      %v497 = vrot.slane %v495, 1
      %v498 = vor.u32 %v493, %v497
      %v500 = vshll.u32 %v464, 16
      %v502 = vrot.slane %v500, 1
      %v503 = vsel %vm479, %v498, %v502
      %v505 = vshrl.u32 %v417, 16
      %v507 = vshll.u32 %v417, 16
      %v509 = vrot.slane %v507, 1
      %v510 = vor.u32 %v505, %v509
      %v512 = vshll.u32 %v465, 16
      %v514 = vrot.slane %v512, 1
      %v515 = vsel %vm479, %v510, %v514
      %v517 = vshrl.u32 %v418, 16
      %v519 = vshll.u32 %v418, 16
      %v521 = vrot.slane %v519, 1
      %v522 = vor.u32 %v517, %v521
      %v524 = vshll.u32 %v466, 16
      %v526 = vrot.slane %v524, 1
      %v527 = vsel %vm479, %v522, %v526
      %v529 = vshrl.u32 %v419, 16
      %v531 = vshll.u32 %v419, 16
      %v533 = vrot.slane %v531, 1
      %v534 = vor.u32 %v529, %v533
      %v536 = vshll.u32 %v467, 16
      %v538 = vrot.slane %v536, 1
      %v539 = vsel %vm479, %v534, %v538
      %v541 = vshrl.u32 %v420, 16
      %v543 = vshll.u32 %v420, 16
      %v545 = vrot.slane %v543, 1
      %v546 = vor.u32 %v541, %v545
      %v548 = vshll.u32 %v468, 16
      %v550 = vrot.slane %v548, 1
      %v551 = vsel %vm479, %v546, %v550
      %v553 = vshrl.u32 %v421, 16
      %v555 = vshll.u32 %v421, 16
      %v557 = vrot.slane %v555, 1
      %v558 = vor.u32 %v553, %v557
      %v560 = vshll.u32 %v469, 16
      %v562 = vrot.slane %v560, 1
      %v563 = vsel %vm479, %v558, %v562
      %v565 = vshrl.u32 %v422, 16
      %v567 = vshll.u32 %v422, 16
      %v569 = vrot.slane %v567, 1
      %v570 = vor.u32 %v565, %v569
      %v572 = vshll.u32 %v470, 16
      %v574 = vrot.slane %v572, 1
      %v575 = vsel %vm479, %v570, %v574
      %v577 = vshrl.u32 %v423, 16
      %v579 = vshll.u32 %v423, 16
      %v581 = vrot.slane %v579, 1
      %v582 = vor.u32 %v577, %v581
      %v584 = vshll.u32 %v471, 16
      %v586 = vrot.slane %v584, 1
      %v587 = vsel %vm479, %v582, %v586
      %v589 = vshrl.u32 %v424, 16
      %v591 = vshll.u32 %v424, 16
      %v593 = vrot.slane %v591, 1
      %v594 = vor.u32 %v589, %v593
      %v596 = vshll.u32 %v472, 16
      %v598 = vrot.slane %v596, 1
      %v599 = vsel %vm479, %v594, %v598
      %v601 = vshrl.u32 %v425, 16
      %v603 = vshll.u32 %v425, 16
      %v605 = vrot.slane %v603, 1
      %v606 = vor.u32 %v601, %v605
      %v608 = vshll.u32 %v473, 16
      %v610 = vrot.slane %v608, 1
      %v611 = vsel %vm479, %v606, %v610
      %v613 = vshrl.u32 %v426, 16
      %v615 = vshll.u32 %v426, 16
      %v617 = vrot.slane %v615, 1
      %v618 = vor.u32 %v613, %v617
      %v620 = vshll.u32 %v474, 16
      %v622 = vrot.slane %v620, 1
      %v623 = vsel %vm479, %v618, %v622
      %v625 = vshrl.u32 %v427, 16
      %v627 = vshll.u32 %v427, 16
      %v629 = vrot.slane %v627, 1
      %v630 = vor.u32 %v625, %v629
      %v632 = vshll.u32 %v475, 16
      %v634 = vrot.slane %v632, 1
      %v635 = vsel %vm479, %v630, %v634
      %v637 = vshrl.u32 %v428, 16
      %v639 = vshll.u32 %v428, 16
      %v641 = vrot.slane %v639, 1
      %v642 = vor.u32 %v637, %v641
      %v644 = vshll.u32 %v476, 16
      %v646 = vrot.slane %v644, 1
      %v647 = vsel %vm479, %v642, %v646
      %v649 = vshrl.u32 %v429, 16
      %v651 = vshll.u32 %v429, 16
      %v653 = vrot.slane %v651, 1
      %v654 = vor.u32 %v649, %v653
      %v656 = vshll.u32 %v477, 16
      %v658 = vrot.slane %v656, 1
      %v659 = vsel %vm479, %v654, %v658
      %v661 = vshrl.u32 %v430, 16
      %v663 = vshll.u32 %v430, 16
      %v665 = vrot.slane %v663, 1
      %v666 = vor.u32 %v661, %v665
      %v668 = vshll.u32 %v478, 16
      %v670 = vrot.slane %v668, 1
      %v671 = vsel %vm479, %v666, %v670
      %672 = vrot.lane.b32.xlu0 %v491, 4
      %v673 = vpop.permute.xlu0 %672
      %674 = vrot.lane.b32.xlu0 %v503, 4
      %v675 = vpop.permute.xlu0 %674
      %676 = vrot.lane.b32.xlu0 %v515, 4
      %v677 = vpop.permute.xlu0 %676
      %678 = vrot.lane.b32.xlu0 %v527, 4
      %v679 = vpop.permute.xlu0 %678
      %680 = vrot.lane.b32.xlu0 %v539, 4
      %v681 = vpop.permute.xlu0 %680
      %682 = vrot.lane.b32.xlu0 %v551, 4
      %v683 = vpop.permute.xlu0 %682
      %684 = vrot.lane.b32.xlu0 %v563, 4
      %v685 = vpop.permute.xlu0 %684
      %686 = vrot.lane.b32.xlu0 %v575, 4
      %v687 = vpop.permute.xlu0 %686
      %688 = vrot.lane.b32.xlu0 %v587, 4
      %v689 = vpop.permute.xlu0 %688
      %690 = vrot.lane.b32.xlu0 %v599, 4
      %v691 = vpop.permute.xlu0 %690
      %692 = vrot.lane.b32.xlu0 %v611, 4
      %v693 = vpop.permute.xlu0 %692
      %694 = vrot.lane.b32.xlu0 %v623, 4
      %v695 = vpop.permute.xlu0 %694
      %696 = vrot.lane.b32.xlu0 %v635, 4
      %v697 = vpop.permute.xlu0 %696
      %698 = vrot.lane.b32.xlu0 %v647, 4
      %v699 = vpop.permute.xlu0 %698
      %700 = vrot.lane.b32.xlu0 %v659, 4
      %v701 = vpop.permute.xlu0 %700
      %702 = vrot.lane.b32.xlu0 %v671, 4
      %v703 = vpop.permute.xlu0 %702
      %vm704 = vcmask 1046528
      %v705 = vrot.slane %v415, 1
      %v706 = vrot.slane %v463, 1
      %v707 = vsel %vm704, %v705, %v706
      %v708 = vrot.slane %v416, 1
      %v709 = vrot.slane %v464, 1
      %v710 = vsel %vm704, %v708, %v709
      %v711 = vrot.slane %v417, 1
      %v712 = vrot.slane %v465, 1
      %v713 = vsel %vm704, %v711, %v712
      %v714 = vrot.slane %v418, 1
      %v715 = vrot.slane %v466, 1
      %v716 = vsel %vm704, %v714, %v715
      %v717 = vrot.slane %v419, 1
      %v718 = vrot.slane %v467, 1
      %v719 = vsel %vm704, %v717, %v718
      %v720 = vrot.slane %v420, 1
      %v721 = vrot.slane %v468, 1
      %v722 = vsel %vm704, %v720, %v721
      %v723 = vrot.slane %v421, 1
      %v724 = vrot.slane %v469, 1
      %v725 = vsel %vm704, %v723, %v724
      %v726 = vrot.slane %v422, 1
      %v727 = vrot.slane %v470, 1
      %v728 = vsel %vm704, %v726, %v727
      %v729 = vrot.slane %v423, 1
      %v730 = vrot.slane %v471, 1
      %v731 = vsel %vm704, %v729, %v730
      %v732 = vrot.slane %v424, 1
      %v733 = vrot.slane %v472, 1
      %v734 = vsel %vm704, %v732, %v733
      %v735 = vrot.slane %v425, 1
      %v736 = vrot.slane %v473, 1
      %v737 = vsel %vm704, %v735, %v736
      %v738 = vrot.slane %v426, 1
      %v739 = vrot.slane %v474, 1
      %v740 = vsel %vm704, %v738, %v739
      %v741 = vrot.slane %v427, 1
      %v742 = vrot.slane %v475, 1
      %v743 = vsel %vm704, %v741, %v742
      %v744 = vrot.slane %v428, 1
      %v745 = vrot.slane %v476, 1
      %v746 = vsel %vm704, %v744, %v745
      %v747 = vrot.slane %v429, 1
      %v748 = vrot.slane %v477, 1
      %v749 = vsel %vm704, %v747, %v748
      %v750 = vrot.slane %v430, 1
      %v751 = vrot.slane %v478, 1
      %v752 = vsel %vm704, %v750, %v751
      %753 = vrot.lane.b32.xlu0 %v707, 8
      %v754 = vpop.permute.xlu0 %753
      %755 = vrot.lane.b32.xlu0 %v710, 8
      %v756 = vpop.permute.xlu0 %755
      %757 = vrot.lane.b32.xlu0 %v713, 8
      %v758 = vpop.permute.xlu0 %757
      %759 = vrot.lane.b32.xlu0 %v716, 8
      %v760 = vpop.permute.xlu0 %759
      %761 = vrot.lane.b32.xlu0 %v719, 8
      %v762 = vpop.permute.xlu0 %761
      %763 = vrot.lane.b32.xlu0 %v722, 8
      %v764 = vpop.permute.xlu0 %763
      %765 = vrot.lane.b32.xlu0 %v725, 8
      %v766 = vpop.permute.xlu0 %765
      %767 = vrot.lane.b32.xlu0 %v728, 8
      %v768 = vpop.permute.xlu0 %767
      %769 = vrot.lane.b32.xlu0 %v731, 8
      %v770 = vpop.permute.xlu0 %769
      %771 = vrot.lane.b32.xlu0 %v734, 8
      %v772 = vpop.permute.xlu0 %771
      %773 = vrot.lane.b32.xlu0 %v737, 8
      %v774 = vpop.permute.xlu0 %773
      %775 = vrot.lane.b32.xlu0 %v740, 8
      %v776 = vpop.permute.xlu0 %775
      %777 = vrot.lane.b32.xlu0 %v743, 8
      %v778 = vpop.permute.xlu0 %777
      %779 = vrot.lane.b32.xlu0 %v746, 8
      %v780 = vpop.permute.xlu0 %779
      %781 = vrot.lane.b32.xlu0 %v749, 8
      %v782 = vpop.permute.xlu0 %781
      %783 = vrot.lane.b32.xlu0 %v752, 8
      %v784 = vpop.permute.xlu0 %783
      %v817 = vunpack.c.l.b16 %v251
      %v818 = vunpack.c.l.b16 %v252
      %v819 = vunpack.c.l.b16 %v254
      %v820 = vunpack.c.l.b16 %v255
      %v821 = vunpack.c.l.b16 %v257
      %v822 = vunpack.c.l.b16 %v258
      %v823 = vunpack.c.l.b16 %v260
      %v824 = vunpack.c.l.b16 %v261
      %v825 = vunpack.c.l.b16 %v263
      %v826 = vunpack.c.l.b16 %v264
      %v827 = vunpack.c.l.b16 %v266
      %v828 = vunpack.c.l.b16 %v267
      %v829 = vunpack.c.l.b16 %v269
      %v830 = vunpack.c.l.b16 %v270
      %v831 = vunpack.c.l.b16 %v272
      %v832 = vunpack.c.l.b16 %v273
      %v833 = vunpack.c.l.b16 %v275
      %v834 = vunpack.c.l.b16 %v276
      %v835 = vunpack.c.l.b16 %v278
      %v836 = vunpack.c.l.b16 %v279
      %v837 = vunpack.c.l.b16 %v281
      %v838 = vunpack.c.l.b16 %v282
      %v839 = vunpack.c.l.b16 %v284
      %v840 = vunpack.c.l.b16 %v285
      %v841 = vunpack.c.l.b16 %v287
      %v842 = vunpack.c.l.b16 %v288
      %v843 = vunpack.c.l.b16 %v290
      %v844 = vunpack.c.l.b16 %v291
      %v845 = vunpack.c.l.b16 %v293
      %v846 = vunpack.c.l.b16 %v294
      %v847 = vunpack.c.l.b16 %v296
      %v848 = vunpack.c.l.b16 %v297
      %v849 = vpack.c.b16 %v818, %v817
      %v850 = vpack.c.b16 %v820, %v819
      %v851 = vpack.c.b16 %v822, %v821
      %v852 = vpack.c.b16 %v824, %v823
      %v853 = vpack.c.b16 %v826, %v825
      %v854 = vpack.c.b16 %v828, %v827
      %v855 = vpack.c.b16 %v830, %v829
      %v856 = vpack.c.b16 %v832, %v831
      %v857 = vpack.c.b16 %v834, %v833
      %v858 = vpack.c.b16 %v836, %v835
      %v859 = vpack.c.b16 %v838, %v837
      %v860 = vpack.c.b16 %v840, %v839
      %v861 = vpack.c.b16 %v842, %v841
      %v862 = vpack.c.b16 %v844, %v843
      %v863 = vpack.c.b16 %v846, %v845
      %v864 = vpack.c.b16 %v848, %v847
      %865 = vrot.lane.b32.xlu0 %v849, 12
      %v866 = vpop.permute.xlu0 %865
      %867 = vrot.lane.b32.xlu0 %v850, 12
      %v868 = vpop.permute.xlu0 %867
      %869 = vrot.lane.b32.xlu0 %v851, 12
      %v870 = vpop.permute.xlu0 %869
      %871 = vrot.lane.b32.xlu0 %v852, 12
      %v872 = vpop.permute.xlu0 %871
      %873 = vrot.lane.b32.xlu0 %v853, 12
      %v874 = vpop.permute.xlu0 %873
      %875 = vrot.lane.b32.xlu0 %v854, 12
      %v876 = vpop.permute.xlu0 %875
      %877 = vrot.lane.b32.xlu0 %v855, 12
      %v878 = vpop.permute.xlu0 %877
      %879 = vrot.lane.b32.xlu0 %v856, 12
      %v880 = vpop.permute.xlu0 %879
      %881 = vrot.lane.b32.xlu0 %v857, 12
      %v882 = vpop.permute.xlu0 %881
      %883 = vrot.lane.b32.xlu0 %v858, 12
      %v884 = vpop.permute.xlu0 %883
      %885 = vrot.lane.b32.xlu0 %v859, 12
      %v886 = vpop.permute.xlu0 %885
      %887 = vrot.lane.b32.xlu0 %v860, 12
      %v888 = vpop.permute.xlu0 %887
      %889 = vrot.lane.b32.xlu0 %v861, 12
      %v890 = vpop.permute.xlu0 %889
      %891 = vrot.lane.b32.xlu0 %v862, 12
      %v892 = vpop.permute.xlu0 %891
      %893 = vrot.lane.b32.xlu0 %v863, 12
      %v894 = vpop.permute.xlu0 %893
      %895 = vrot.lane.b32.xlu0 %v864, 12
      %v896 = vpop.permute.xlu0 %895
      %v913 = vunpack.c.l.b16 %v253
      %v914 = vunpack.c.l.b16 %v256
      %v915 = vunpack.c.l.b16 %v259
      %v916 = vunpack.c.l.b16 %v262
      %v917 = vunpack.c.l.b16 %v265
      %v918 = vunpack.c.l.b16 %v268
      %v919 = vunpack.c.l.b16 %v271
      %v920 = vunpack.c.l.b16 %v274
      %v921 = vunpack.c.l.b16 %v277
      %v922 = vunpack.c.l.b16 %v280
      %v923 = vunpack.c.l.b16 %v283
      %v924 = vunpack.c.l.b16 %v286
      %v925 = vunpack.c.l.b16 %v289
      %v926 = vunpack.c.l.b16 %v292
      %v927 = vunpack.c.l.b16 %v295
      %v928 = vunpack.c.l.b16 %v298
      %v929 = vpack.c.b16 %v913, %v913
      %v930 = vpack.c.b16 %v914, %v914
      %v931 = vpack.c.b16 %v915, %v915
      %v932 = vpack.c.b16 %v916, %v916
      %v933 = vpack.c.b16 %v917, %v917
      %v934 = vpack.c.b16 %v918, %v918
      %v935 = vpack.c.b16 %v919, %v919
      %v936 = vpack.c.b16 %v920, %v920
      %v937 = vpack.c.b16 %v921, %v921
      %v938 = vpack.c.b16 %v922, %v922
      %v939 = vpack.c.b16 %v923, %v923
      %v940 = vpack.c.b16 %v924, %v924
      %v941 = vpack.c.b16 %v925, %v925
      %v942 = vpack.c.b16 %v926, %v926
      %v943 = vpack.c.b16 %v927, %v927
      %v944 = vpack.c.b16 %v928, %v928
      %v946 = vshrl.u32 %v849, 16
      %v948 = vshll.u32 %v849, 16
      %v950 = vrot.slane %v948, 1
      %v951 = vor.u32 %v946, %v950
      %v953 = vshll.u32 %v929, 16
      %v955 = vrot.slane %v953, 1
      %v956 = vsel %vm479, %v951, %v955
      %v958 = vshrl.u32 %v850, 16
      %v960 = vshll.u32 %v850, 16
      %v962 = vrot.slane %v960, 1
      %v963 = vor.u32 %v958, %v962
      %v965 = vshll.u32 %v930, 16
      %v967 = vrot.slane %v965, 1
      %v968 = vsel %vm479, %v963, %v967
      %v970 = vshrl.u32 %v851, 16
      %v972 = vshll.u32 %v851, 16
      %v974 = vrot.slane %v972, 1
      %v975 = vor.u32 %v970, %v974
      %v977 = vshll.u32 %v931, 16
      %v979 = vrot.slane %v977, 1
      %v980 = vsel %vm479, %v975, %v979
      %v982 = vshrl.u32 %v852, 16
      %v984 = vshll.u32 %v852, 16
      %v986 = vrot.slane %v984, 1
      %v987 = vor.u32 %v982, %v986
      %v989 = vshll.u32 %v932, 16
      %v991 = vrot.slane %v989, 1
      %v992 = vsel %vm479, %v987, %v991
      %v994 = vshrl.u32 %v853, 16
      %v996 = vshll.u32 %v853, 16
      %v998 = vrot.slane %v996, 1
      %v999 = vor.u32 %v994, %v998
      %v1001 = vshll.u32 %v933, 16
      %v1003 = vrot.slane %v1001, 1
      %v1004 = vsel %vm479, %v999, %v1003
      %v1006 = vshrl.u32 %v854, 16
      %v1008 = vshll.u32 %v854, 16
      %v1010 = vrot.slane %v1008, 1
      %v1011 = vor.u32 %v1006, %v1010
      %v1013 = vshll.u32 %v934, 16
      %v1015 = vrot.slane %v1013, 1
      %v1016 = vsel %vm479, %v1011, %v1015
      %v1018 = vshrl.u32 %v855, 16
      %v1020 = vshll.u32 %v855, 16
      %v1022 = vrot.slane %v1020, 1
      %v1023 = vor.u32 %v1018, %v1022
      %v1025 = vshll.u32 %v935, 16
      %v1027 = vrot.slane %v1025, 1
      %v1028 = vsel %vm479, %v1023, %v1027
      %v1030 = vshrl.u32 %v856, 16
      %v1032 = vshll.u32 %v856, 16
      %v1034 = vrot.slane %v1032, 1
      %v1035 = vor.u32 %v1030, %v1034
      %v1037 = vshll.u32 %v936, 16
      %v1039 = vrot.slane %v1037, 1
      %v1040 = vsel %vm479, %v1035, %v1039
      %v1042 = vshrl.u32 %v857, 16
      %v1044 = vshll.u32 %v857, 16
      %v1046 = vrot.slane %v1044, 1
      %v1047 = vor.u32 %v1042, %v1046
      %v1049 = vshll.u32 %v937, 16
      %v1051 = vrot.slane %v1049, 1
      %v1052 = vsel %vm479, %v1047, %v1051
      %v1054 = vshrl.u32 %v858, 16
      %v1056 = vshll.u32 %v858, 16
      %v1058 = vrot.slane %v1056, 1
      %v1059 = vor.u32 %v1054, %v1058
      %v1061 = vshll.u32 %v938, 16
      %v1063 = vrot.slane %v1061, 1
      %v1064 = vsel %vm479, %v1059, %v1063
      %v1066 = vshrl.u32 %v859, 16
      %v1068 = vshll.u32 %v859, 16
      %v1070 = vrot.slane %v1068, 1
      %v1071 = vor.u32 %v1066, %v1070
      %v1073 = vshll.u32 %v939, 16
      %v1075 = vrot.slane %v1073, 1
      %v1076 = vsel %vm479, %v1071, %v1075
      %v1078 = vshrl.u32 %v860, 16
      %v1080 = vshll.u32 %v860, 16
      %v1082 = vrot.slane %v1080, 1
      %v1083 = vor.u32 %v1078, %v1082
      %v1085 = vshll.u32 %v940, 16
      %v1087 = vrot.slane %v1085, 1
      %v1088 = vsel %vm479, %v1083, %v1087
      %v1090 = vshrl.u32 %v861, 16
      %v1092 = vshll.u32 %v861, 16
      %v1094 = vrot.slane %v1092, 1
      %v1095 = vor.u32 %v1090, %v1094
      %v1097 = vshll.u32 %v941, 16
      %v1099 = vrot.slane %v1097, 1
      %v1100 = vsel %vm479, %v1095, %v1099
      %v1102 = vshrl.u32 %v862, 16
      %v1104 = vshll.u32 %v862, 16
      %v1106 = vrot.slane %v1104, 1
      %v1107 = vor.u32 %v1102, %v1106
      %v1109 = vshll.u32 %v942, 16
      %v1111 = vrot.slane %v1109, 1
      %v1112 = vsel %vm479, %v1107, %v1111
      %v1114 = vshrl.u32 %v863, 16
      %v1116 = vshll.u32 %v863, 16
      %v1118 = vrot.slane %v1116, 1
      %v1119 = vor.u32 %v1114, %v1118
      %v1121 = vshll.u32 %v943, 16
      %v1123 = vrot.slane %v1121, 1
      %v1124 = vsel %vm479, %v1119, %v1123
      %v1126 = vshrl.u32 %v864, 16
      %v1128 = vshll.u32 %v864, 16
      %v1130 = vrot.slane %v1128, 1
      %v1131 = vor.u32 %v1126, %v1130
      %v1133 = vshll.u32 %v944, 16
      %v1135 = vrot.slane %v1133, 1
      %v1136 = vsel %vm479, %v1131, %v1135
      %1137 = vrot.lane.b32.xlu0 %v956, 16
      %v1138 = vpop.permute.xlu0 %1137
      %1139 = vrot.lane.b32.xlu0 %v968, 16
      %v1140 = vpop.permute.xlu0 %1139
      %1141 = vrot.lane.b32.xlu0 %v980, 16
      %v1142 = vpop.permute.xlu0 %1141
      %1143 = vrot.lane.b32.xlu0 %v992, 16
      %v1144 = vpop.permute.xlu0 %1143
      %1145 = vrot.lane.b32.xlu0 %v1004, 16
      %v1146 = vpop.permute.xlu0 %1145
      %1147 = vrot.lane.b32.xlu0 %v1016, 16
      %v1148 = vpop.permute.xlu0 %1147
      %1149 = vrot.lane.b32.xlu0 %v1028, 16
      %v1150 = vpop.permute.xlu0 %1149
      %1151 = vrot.lane.b32.xlu0 %v1040, 16
      %v1152 = vpop.permute.xlu0 %1151
      %1153 = vrot.lane.b32.xlu0 %v1052, 16
      %v1154 = vpop.permute.xlu0 %1153
      %1155 = vrot.lane.b32.xlu0 %v1064, 16
      %v1156 = vpop.permute.xlu0 %1155
      %1157 = vrot.lane.b32.xlu0 %v1076, 16
      %v1158 = vpop.permute.xlu0 %1157
      %1159 = vrot.lane.b32.xlu0 %v1088, 16
      %v1160 = vpop.permute.xlu0 %1159
      %1161 = vrot.lane.b32.xlu0 %v1100, 16
      %v1162 = vpop.permute.xlu0 %1161
      %1163 = vrot.lane.b32.xlu0 %v1112, 16
      %v1164 = vpop.permute.xlu0 %1163
      %1165 = vrot.lane.b32.xlu0 %v1124, 16
      %v1166 = vpop.permute.xlu0 %1165
      %1167 = vrot.lane.b32.xlu0 %v1136, 16
      %v1168 = vpop.permute.xlu0 %1167
      %v1169 = vrot.slane %v849, 1
      %v1170 = vrot.slane %v929, 1
      %v1171 = vsel %vm704, %v1169, %v1170
      %v1172 = vrot.slane %v850, 1
      %v1173 = vrot.slane %v930, 1
      %v1174 = vsel %vm704, %v1172, %v1173
      %v1175 = vrot.slane %v851, 1
      %v1176 = vrot.slane %v931, 1
      %v1177 = vsel %vm704, %v1175, %v1176
      %v1178 = vrot.slane %v852, 1
      %v1179 = vrot.slane %v932, 1
      %v1180 = vsel %vm704, %v1178, %v1179
      %v1181 = vrot.slane %v853, 1
      %v1182 = vrot.slane %v933, 1
      %v1183 = vsel %vm704, %v1181, %v1182
      %v1184 = vrot.slane %v854, 1
      %v1185 = vrot.slane %v934, 1
      %v1186 = vsel %vm704, %v1184, %v1185
      %v1187 = vrot.slane %v855, 1
      %v1188 = vrot.slane %v935, 1
      %v1189 = vsel %vm704, %v1187, %v1188
      %v1190 = vrot.slane %v856, 1
      %v1191 = vrot.slane %v936, 1
      %v1192 = vsel %vm704, %v1190, %v1191
      %v1193 = vrot.slane %v857, 1
      %v1194 = vrot.slane %v937, 1
      %v1195 = vsel %vm704, %v1193, %v1194
      %v1196 = vrot.slane %v858, 1
      %v1197 = vrot.slane %v938, 1
      %v1198 = vsel %vm704, %v1196, %v1197
      %v1199 = vrot.slane %v859, 1
      %v1200 = vrot.slane %v939, 1
      %v1201 = vsel %vm704, %v1199, %v1200
      %v1202 = vrot.slane %v860, 1
      %v1203 = vrot.slane %v940, 1
      %v1204 = vsel %vm704, %v1202, %v1203
      %v1205 = vrot.slane %v861, 1
      %v1206 = vrot.slane %v941, 1
      %v1207 = vsel %vm704, %v1205, %v1206
      %v1208 = vrot.slane %v862, 1
      %v1209 = vrot.slane %v942, 1
      %v1210 = vsel %vm704, %v1208, %v1209
      %v1211 = vrot.slane %v863, 1
      %v1212 = vrot.slane %v943, 1
      %v1213 = vsel %vm704, %v1211, %v1212
      %v1214 = vrot.slane %v864, 1
      %v1215 = vrot.slane %v944, 1
      %v1216 = vsel %vm704, %v1214, %v1215
      %1217 = vrot.lane.b32.xlu0 %v1171, 20
      %v1218 = vpop.permute.xlu0 %1217
      %1219 = vrot.lane.b32.xlu0 %v1174, 20
      %v1220 = vpop.permute.xlu0 %1219
      %1221 = vrot.lane.b32.xlu0 %v1177, 20
      %v1222 = vpop.permute.xlu0 %1221
      %1223 = vrot.lane.b32.xlu0 %v1180, 20
      %v1224 = vpop.permute.xlu0 %1223
      %1225 = vrot.lane.b32.xlu0 %v1183, 20
      %v1226 = vpop.permute.xlu0 %1225
      %1227 = vrot.lane.b32.xlu0 %v1186, 20
      %v1228 = vpop.permute.xlu0 %1227
      %1229 = vrot.lane.b32.xlu0 %v1189, 20
      %v1230 = vpop.permute.xlu0 %1229
      %1231 = vrot.lane.b32.xlu0 %v1192, 20
      %v1232 = vpop.permute.xlu0 %1231
      %1233 = vrot.lane.b32.xlu0 %v1195, 20
      %v1234 = vpop.permute.xlu0 %1233
      %1235 = vrot.lane.b32.xlu0 %v1198, 20
      %v1236 = vpop.permute.xlu0 %1235
      %1237 = vrot.lane.b32.xlu0 %v1201, 20
      %v1238 = vpop.permute.xlu0 %1237
      %1239 = vrot.lane.b32.xlu0 %v1204, 20
      %v1240 = vpop.permute.xlu0 %1239
      %1241 = vrot.lane.b32.xlu0 %v1207, 20
      %v1242 = vpop.permute.xlu0 %1241
      %1243 = vrot.lane.b32.xlu0 %v1210, 20
      %v1244 = vpop.permute.xlu0 %1243
      %1245 = vrot.lane.b32.xlu0 %v1213, 20
      %v1246 = vpop.permute.xlu0 %1245
      %1247 = vrot.lane.b32.xlu0 %v1216, 20
      %v1248 = vpop.permute.xlu0 %1247
      %v1281 = vunpack.c.l.b16 %v303
      %v1282 = vunpack.c.l.b16 %v304
      %v1283 = vunpack.c.l.b16 %v306
      %v1284 = vunpack.c.l.b16 %v307
      %v1285 = vunpack.c.l.b16 %v309
      %v1286 = vunpack.c.l.b16 %v310
      %v1287 = vunpack.c.l.b16 %v312
      %v1288 = vunpack.c.l.b16 %v313
      %v1289 = vunpack.c.l.b16 %v315
      %v1290 = vunpack.c.l.b16 %v316
      %v1291 = vunpack.c.l.b16 %v318
      %v1292 = vunpack.c.l.b16 %v319
      %v1293 = vunpack.c.l.b16 %v321
      %v1294 = vunpack.c.l.b16 %v322
      %v1295 = vunpack.c.l.b16 %v324
      %v1296 = vunpack.c.l.b16 %v325
      %v1297 = vunpack.c.l.b16 %v327
      %v1298 = vunpack.c.l.b16 %v328
      %v1299 = vunpack.c.l.b16 %v330
      %v1300 = vunpack.c.l.b16 %v331
      %v1301 = vunpack.c.l.b16 %v333
      %v1302 = vunpack.c.l.b16 %v334
      %v1303 = vunpack.c.l.b16 %v336
      %v1304 = vunpack.c.l.b16 %v337
      %v1305 = vunpack.c.l.b16 %v339
      %v1306 = vunpack.c.l.b16 %v340
      %v1307 = vunpack.c.l.b16 %v342
      %v1308 = vunpack.c.l.b16 %v343
      %v1309 = vunpack.c.l.b16 %v345
      %v1310 = vunpack.c.l.b16 %v346
      %v1311 = vunpack.c.l.b16 %v348
      %v1312 = vunpack.c.l.b16 %v349
      %v1313 = vpack.c.b16 %v1282, %v1281
      %v1314 = vpack.c.b16 %v1284, %v1283
      %v1315 = vpack.c.b16 %v1286, %v1285
      %v1316 = vpack.c.b16 %v1288, %v1287
      %v1317 = vpack.c.b16 %v1290, %v1289
      %v1318 = vpack.c.b16 %v1292, %v1291
      %v1319 = vpack.c.b16 %v1294, %v1293
      %v1320 = vpack.c.b16 %v1296, %v1295
      %v1321 = vpack.c.b16 %v1298, %v1297
      %v1322 = vpack.c.b16 %v1300, %v1299
      %v1323 = vpack.c.b16 %v1302, %v1301
      %v1324 = vpack.c.b16 %v1304, %v1303
      %v1325 = vpack.c.b16 %v1306, %v1305
      %v1326 = vpack.c.b16 %v1308, %v1307
      %v1327 = vpack.c.b16 %v1310, %v1309
      %v1328 = vpack.c.b16 %v1312, %v1311
      %1329 = vrot.lane.b32.xlu0 %v1313, 24
      %v1330 = vpop.permute.xlu0 %1329
      %1331 = vrot.lane.b32.xlu0 %v1314, 24
      %v1332 = vpop.permute.xlu0 %1331
      %1333 = vrot.lane.b32.xlu0 %v1315, 24
      %v1334 = vpop.permute.xlu0 %1333
      %1335 = vrot.lane.b32.xlu0 %v1316, 24
      %v1336 = vpop.permute.xlu0 %1335
      %1337 = vrot.lane.b32.xlu0 %v1317, 24
      %v1338 = vpop.permute.xlu0 %1337
      %1339 = vrot.lane.b32.xlu0 %v1318, 24
      %v1340 = vpop.permute.xlu0 %1339
      %1341 = vrot.lane.b32.xlu0 %v1319, 24
      %v1342 = vpop.permute.xlu0 %1341
      %1343 = vrot.lane.b32.xlu0 %v1320, 24
      %v1344 = vpop.permute.xlu0 %1343
      %1345 = vrot.lane.b32.xlu0 %v1321, 24
      %v1346 = vpop.permute.xlu0 %1345
      %1347 = vrot.lane.b32.xlu0 %v1322, 24
      %v1348 = vpop.permute.xlu0 %1347
      %1349 = vrot.lane.b32.xlu0 %v1323, 24
      %v1350 = vpop.permute.xlu0 %1349
      %1351 = vrot.lane.b32.xlu0 %v1324, 24
      %v1352 = vpop.permute.xlu0 %1351
      %1353 = vrot.lane.b32.xlu0 %v1325, 24
      %v1354 = vpop.permute.xlu0 %1353
      %1355 = vrot.lane.b32.xlu0 %v1326, 24
      %v1356 = vpop.permute.xlu0 %1355
      %1357 = vrot.lane.b32.xlu0 %v1327, 24
      %v1358 = vpop.permute.xlu0 %1357
      %1359 = vrot.lane.b32.xlu0 %v1328, 24
      %v1360 = vpop.permute.xlu0 %1359
      %v1377 = vunpack.c.l.b16 %v305
      %v1378 = vunpack.c.l.b16 %v308
      %v1379 = vunpack.c.l.b16 %v311
      %v1380 = vunpack.c.l.b16 %v314
      %v1381 = vunpack.c.l.b16 %v317
      %v1382 = vunpack.c.l.b16 %v320
      %v1383 = vunpack.c.l.b16 %v323
      %v1384 = vunpack.c.l.b16 %v326
      %v1385 = vunpack.c.l.b16 %v329
      %v1386 = vunpack.c.l.b16 %v332
      %v1387 = vunpack.c.l.b16 %v335
      %v1388 = vunpack.c.l.b16 %v338
      %v1389 = vunpack.c.l.b16 %v341
      %v1390 = vunpack.c.l.b16 %v344
      %v1391 = vunpack.c.l.b16 %v347
      %v1392 = vunpack.c.l.b16 %v350
      %v1393 = vpack.c.b16 %v1377, %v1377
      %v1394 = vpack.c.b16 %v1378, %v1378
      %v1395 = vpack.c.b16 %v1379, %v1379
      %v1396 = vpack.c.b16 %v1380, %v1380
      %v1397 = vpack.c.b16 %v1381, %v1381
      %v1398 = vpack.c.b16 %v1382, %v1382
      %v1399 = vpack.c.b16 %v1383, %v1383
      %v1400 = vpack.c.b16 %v1384, %v1384
      %v1401 = vpack.c.b16 %v1385, %v1385
      %v1402 = vpack.c.b16 %v1386, %v1386
      %v1403 = vpack.c.b16 %v1387, %v1387
      %v1404 = vpack.c.b16 %v1388, %v1388
      %v1405 = vpack.c.b16 %v1389, %v1389
      %v1406 = vpack.c.b16 %v1390, %v1390
      %v1407 = vpack.c.b16 %v1391, %v1391
      %v1408 = vpack.c.b16 %v1392, %v1392
      %v1410 = vshrl.u32 %v1313, 16
      %v1412 = vshll.u32 %v1313, 16
      %v1414 = vrot.slane %v1412, 1
      %v1415 = vor.u32 %v1410, %v1414
      %v1417 = vshll.u32 %v1393, 16
      %v1419 = vrot.slane %v1417, 1
      %v1420 = vsel %vm479, %v1415, %v1419
      %v1422 = vshrl.u32 %v1314, 16
      %v1424 = vshll.u32 %v1314, 16
      %v1426 = vrot.slane %v1424, 1
      %v1427 = vor.u32 %v1422, %v1426
      %v1429 = vshll.u32 %v1394, 16
      %v1431 = vrot.slane %v1429, 1
      %v1432 = vsel %vm479, %v1427, %v1431
      %v1434 = vshrl.u32 %v1315, 16
      %v1436 = vshll.u32 %v1315, 16
      %v1438 = vrot.slane %v1436, 1
      %v1439 = vor.u32 %v1434, %v1438
      %v1441 = vshll.u32 %v1395, 16
      %v1443 = vrot.slane %v1441, 1
      %v1444 = vsel %vm479, %v1439, %v1443
      %v1446 = vshrl.u32 %v1316, 16
      %v1448 = vshll.u32 %v1316, 16
      %v1450 = vrot.slane %v1448, 1
      %v1451 = vor.u32 %v1446, %v1450
      %v1453 = vshll.u32 %v1396, 16
      %v1455 = vrot.slane %v1453, 1
      %v1456 = vsel %vm479, %v1451, %v1455
      %v1458 = vshrl.u32 %v1317, 16
      %v1460 = vshll.u32 %v1317, 16
      %v1462 = vrot.slane %v1460, 1
      %v1463 = vor.u32 %v1458, %v1462
      %v1465 = vshll.u32 %v1397, 16
      %v1467 = vrot.slane %v1465, 1
      %v1468 = vsel %vm479, %v1463, %v1467
      %v1470 = vshrl.u32 %v1318, 16
      %v1472 = vshll.u32 %v1318, 16
      %v1474 = vrot.slane %v1472, 1
      %v1475 = vor.u32 %v1470, %v1474
      %v1477 = vshll.u32 %v1398, 16
      %v1479 = vrot.slane %v1477, 1
      %v1480 = vsel %vm479, %v1475, %v1479
      %v1482 = vshrl.u32 %v1319, 16
      %v1484 = vshll.u32 %v1319, 16
      %v1486 = vrot.slane %v1484, 1
      %v1487 = vor.u32 %v1482, %v1486
      %v1489 = vshll.u32 %v1399, 16
      %v1491 = vrot.slane %v1489, 1
      %v1492 = vsel %vm479, %v1487, %v1491
      %v1494 = vshrl.u32 %v1320, 16
      %v1496 = vshll.u32 %v1320, 16
      %v1498 = vrot.slane %v1496, 1
      %v1499 = vor.u32 %v1494, %v1498
      %v1501 = vshll.u32 %v1400, 16
      %v1503 = vrot.slane %v1501, 1
      %v1504 = vsel %vm479, %v1499, %v1503
      %v1506 = vshrl.u32 %v1321, 16
      %v1508 = vshll.u32 %v1321, 16
      %v1510 = vrot.slane %v1508, 1
      %v1511 = vor.u32 %v1506, %v1510
      %v1513 = vshll.u32 %v1401, 16
      %v1515 = vrot.slane %v1513, 1
      %v1516 = vsel %vm479, %v1511, %v1515
      %v1518 = vshrl.u32 %v1322, 16
      %v1520 = vshll.u32 %v1322, 16
      %v1522 = vrot.slane %v1520, 1
      %v1523 = vor.u32 %v1518, %v1522
      %v1525 = vshll.u32 %v1402, 16
      %v1527 = vrot.slane %v1525, 1
      %v1528 = vsel %vm479, %v1523, %v1527
      %v1530 = vshrl.u32 %v1323, 16
      %v1532 = vshll.u32 %v1323, 16
      %v1534 = vrot.slane %v1532, 1
      %v1535 = vor.u32 %v1530, %v1534
      %v1537 = vshll.u32 %v1403, 16
      %v1539 = vrot.slane %v1537, 1
      %v1540 = vsel %vm479, %v1535, %v1539
      %v1542 = vshrl.u32 %v1324, 16
      %v1544 = vshll.u32 %v1324, 16
      %v1546 = vrot.slane %v1544, 1
      %v1547 = vor.u32 %v1542, %v1546
      %v1549 = vshll.u32 %v1404, 16
      %v1551 = vrot.slane %v1549, 1
      %v1552 = vsel %vm479, %v1547, %v1551
      %v1554 = vshrl.u32 %v1325, 16
      %v1556 = vshll.u32 %v1325, 16
      %v1558 = vrot.slane %v1556, 1
      %v1559 = vor.u32 %v1554, %v1558
      %v1561 = vshll.u32 %v1405, 16
      %v1563 = vrot.slane %v1561, 1
      %v1564 = vsel %vm479, %v1559, %v1563
      %v1566 = vshrl.u32 %v1326, 16
      %v1568 = vshll.u32 %v1326, 16
      %v1570 = vrot.slane %v1568, 1
      %v1571 = vor.u32 %v1566, %v1570
      %v1573 = vshll.u32 %v1406, 16
      %v1575 = vrot.slane %v1573, 1
      %v1576 = vsel %vm479, %v1571, %v1575
      %v1578 = vshrl.u32 %v1327, 16
      %v1580 = vshll.u32 %v1327, 16
      %v1582 = vrot.slane %v1580, 1
      %v1583 = vor.u32 %v1578, %v1582
      %v1585 = vshll.u32 %v1407, 16
      %v1587 = vrot.slane %v1585, 1
      %v1588 = vsel %vm479, %v1583, %v1587
      %v1590 = vshrl.u32 %v1328, 16
      %v1592 = vshll.u32 %v1328, 16
      %v1594 = vrot.slane %v1592, 1
      %v1595 = vor.u32 %v1590, %v1594
      %v1597 = vshll.u32 %v1408, 16
      %v1599 = vrot.slane %v1597, 1
      %v1600 = vsel %vm479, %v1595, %v1599
      %1601 = vrot.lane.b32.xlu0 %v1420, 28
      %v1602 = vpop.permute.xlu0 %1601
      %1603 = vrot.lane.b32.xlu0 %v1432, 28
      %v1604 = vpop.permute.xlu0 %1603
      %1605 = vrot.lane.b32.xlu0 %v1444, 28
      %v1606 = vpop.permute.xlu0 %1605
      %1607 = vrot.lane.b32.xlu0 %v1456, 28
      %v1608 = vpop.permute.xlu0 %1607
      %1609 = vrot.lane.b32.xlu0 %v1468, 28
      %v1610 = vpop.permute.xlu0 %1609
      %1611 = vrot.lane.b32.xlu0 %v1480, 28
      %v1612 = vpop.permute.xlu0 %1611
      %1613 = vrot.lane.b32.xlu0 %v1492, 28
      %v1614 = vpop.permute.xlu0 %1613
      %1615 = vrot.lane.b32.xlu0 %v1504, 28
      %v1616 = vpop.permute.xlu0 %1615
      %1617 = vrot.lane.b32.xlu0 %v1516, 28
      %v1618 = vpop.permute.xlu0 %1617
      %1619 = vrot.lane.b32.xlu0 %v1528, 28
      %v1620 = vpop.permute.xlu0 %1619
      %1621 = vrot.lane.b32.xlu0 %v1540, 28
      %v1622 = vpop.permute.xlu0 %1621
      %1623 = vrot.lane.b32.xlu0 %v1552, 28
      %v1624 = vpop.permute.xlu0 %1623
      %1625 = vrot.lane.b32.xlu0 %v1564, 28
      %v1626 = vpop.permute.xlu0 %1625
      %1627 = vrot.lane.b32.xlu0 %v1576, 28
      %v1628 = vpop.permute.xlu0 %1627
      %1629 = vrot.lane.b32.xlu0 %v1588, 28
      %v1630 = vpop.permute.xlu0 %1629
      %1631 = vrot.lane.b32.xlu0 %v1600, 28
      %v1632 = vpop.permute.xlu0 %1631
      %v1633 = vrot.slane %v1313, 1
      %v1634 = vrot.slane %v1393, 1
      %v1635 = vsel %vm704, %v1633, %v1634
      %v1636 = vrot.slane %v1314, 1
      %v1637 = vrot.slane %v1394, 1
      %v1638 = vsel %vm704, %v1636, %v1637
      %v1639 = vrot.slane %v1315, 1
      %v1640 = vrot.slane %v1395, 1
      %v1641 = vsel %vm704, %v1639, %v1640
      %v1642 = vrot.slane %v1316, 1
      %v1643 = vrot.slane %v1396, 1
      %v1644 = vsel %vm704, %v1642, %v1643
      %v1645 = vrot.slane %v1317, 1
      %v1646 = vrot.slane %v1397, 1
      %v1647 = vsel %vm704, %v1645, %v1646
      %v1648 = vrot.slane %v1318, 1
      %v1649 = vrot.slane %v1398, 1
      %v1650 = vsel %vm704, %v1648, %v1649
      %v1651 = vrot.slane %v1319, 1
      %v1652 = vrot.slane %v1399, 1
      %v1653 = vsel %vm704, %v1651, %v1652
      %v1654 = vrot.slane %v1320, 1
      %v1655 = vrot.slane %v1400, 1
      %v1656 = vsel %vm704, %v1654, %v1655
      %v1657 = vrot.slane %v1321, 1
      %v1658 = vrot.slane %v1401, 1
      %v1659 = vsel %vm704, %v1657, %v1658
      %v1660 = vrot.slane %v1322, 1
      %v1661 = vrot.slane %v1402, 1
      %v1662 = vsel %vm704, %v1660, %v1661
      %v1663 = vrot.slane %v1323, 1
      %v1664 = vrot.slane %v1403, 1
      %v1665 = vsel %vm704, %v1663, %v1664
      %v1666 = vrot.slane %v1324, 1
      %v1667 = vrot.slane %v1404, 1
      %v1668 = vsel %vm704, %v1666, %v1667
      %v1669 = vrot.slane %v1325, 1
      %v1670 = vrot.slane %v1405, 1
      %v1671 = vsel %vm704, %v1669, %v1670
      %v1672 = vrot.slane %v1326, 1
      %v1673 = vrot.slane %v1406, 1
      %v1674 = vsel %vm704, %v1672, %v1673
      %v1675 = vrot.slane %v1327, 1
      %v1676 = vrot.slane %v1407, 1
      %v1677 = vsel %vm704, %v1675, %v1676
      %v1678 = vrot.slane %v1328, 1
      %v1679 = vrot.slane %v1408, 1
      %v1680 = vsel %vm704, %v1678, %v1679
      %1681 = vrot.lane.b32.xlu0 %v1635, 32
      %v1682 = vpop.permute.xlu0 %1681
      %1683 = vrot.lane.b32.xlu0 %v1638, 32
      %v1684 = vpop.permute.xlu0 %1683
      %1685 = vrot.lane.b32.xlu0 %v1641, 32
      %v1686 = vpop.permute.xlu0 %1685
      %1687 = vrot.lane.b32.xlu0 %v1644, 32
      %v1688 = vpop.permute.xlu0 %1687
      %1689 = vrot.lane.b32.xlu0 %v1647, 32
      %v1690 = vpop.permute.xlu0 %1689
      %1691 = vrot.lane.b32.xlu0 %v1650, 32
      %v1692 = vpop.permute.xlu0 %1691
      %1693 = vrot.lane.b32.xlu0 %v1653, 32
      %v1694 = vpop.permute.xlu0 %1693
      %1695 = vrot.lane.b32.xlu0 %v1656, 32
      %v1696 = vpop.permute.xlu0 %1695
      %1697 = vrot.lane.b32.xlu0 %v1659, 32
      %v1698 = vpop.permute.xlu0 %1697
      %1699 = vrot.lane.b32.xlu0 %v1662, 32
      %v1700 = vpop.permute.xlu0 %1699
      %1701 = vrot.lane.b32.xlu0 %v1665, 32
      %v1702 = vpop.permute.xlu0 %1701
      %1703 = vrot.lane.b32.xlu0 %v1668, 32
      %v1704 = vpop.permute.xlu0 %1703
      %1705 = vrot.lane.b32.xlu0 %v1671, 32
      %v1706 = vpop.permute.xlu0 %1705
      %1707 = vrot.lane.b32.xlu0 %v1674, 32
      %v1708 = vpop.permute.xlu0 %1707
      %1709 = vrot.lane.b32.xlu0 %v1677, 32
      %v1710 = vpop.permute.xlu0 %1709
      %1711 = vrot.lane.b32.xlu0 %v1680, 32
      %v1712 = vpop.permute.xlu0 %1711
      %vm1713 = vcmask 31744
      %v1715 = vsel %vm1713, %v415, %v673
      %v1717 = vsel %vm1713, %v416, %v675
      %v1719 = vsel %vm1713, %v417, %v677
      %v1721 = vsel %vm1713, %v418, %v679
      %v1723 = vsel %vm1713, %v419, %v681
      %v1725 = vsel %vm1713, %v420, %v683
      %v1727 = vsel %vm1713, %v421, %v685
      %v1729 = vsel %vm1713, %v422, %v687
      %v1731 = vsel %vm1713, %v423, %v689
      %v1733 = vsel %vm1713, %v424, %v691
      %v1735 = vsel %vm1713, %v425, %v693
      %v1737 = vsel %vm1713, %v426, %v695
      %v1739 = vsel %vm1713, %v427, %v697
      %v1741 = vsel %vm1713, %v428, %v699
      %v1743 = vsel %vm1713, %v429, %v701
      %v1745 = vsel %vm1713, %v430, %v703
      %vm1746 = vcmask 64512
      %v1748 = vsel %vm1746, %v1715, %v754
      %v1750 = vsel %vm1746, %v1717, %v756
      %v1752 = vsel %vm1746, %v1719, %v758
      %v1754 = vsel %vm1746, %v1721, %v760
      %v1756 = vsel %vm1746, %v1723, %v762
      %v1758 = vsel %vm1746, %v1725, %v764
      %v1760 = vsel %vm1746, %v1727, %v766
      %v1762 = vsel %vm1746, %v1729, %v768
      %v1764 = vsel %vm1746, %v1731, %v770
      %v1766 = vsel %vm1746, %v1733, %v772
      %v1768 = vsel %vm1746, %v1735, %v774
      %v1770 = vsel %vm1746, %v1737, %v776
      %v1772 = vsel %vm1746, %v1739, %v778
      %v1774 = vsel %vm1746, %v1741, %v780
      %v1776 = vsel %vm1746, %v1743, %v782
      %v1778 = vsel %vm1746, %v1745, %v784
      %vm1779 = vcmask 97280
      %v1781 = vsel %vm1779, %v1748, %v866
      %v1783 = vsel %vm1779, %v1750, %v868
      %v1785 = vsel %vm1779, %v1752, %v870
      %v1787 = vsel %vm1779, %v1754, %v872
      %v1789 = vsel %vm1779, %v1756, %v874
      %v1791 = vsel %vm1779, %v1758, %v876
      %v1793 = vsel %vm1779, %v1760, %v878
      %v1795 = vsel %vm1779, %v1762, %v880
      %v1797 = vsel %vm1779, %v1764, %v882
      %v1799 = vsel %vm1779, %v1766, %v884
      %v1801 = vsel %vm1779, %v1768, %v886
      %v1803 = vsel %vm1779, %v1770, %v888
      %v1805 = vsel %vm1779, %v1772, %v890
      %v1807 = vsel %vm1779, %v1774, %v892
      %v1809 = vsel %vm1779, %v1776, %v894
      %v1811 = vsel %vm1779, %v1778, %v896
      %vm1812 = vcmask 130048
      %v1814 = vsel %vm1812, %v1781, %v1138
      %v1816 = vsel %vm1812, %v1783, %v1140
      %v1818 = vsel %vm1812, %v1785, %v1142
      %v1820 = vsel %vm1812, %v1787, %v1144
      %v1822 = vsel %vm1812, %v1789, %v1146
      %v1824 = vsel %vm1812, %v1791, %v1148
      %v1826 = vsel %vm1812, %v1793, %v1150
      %v1828 = vsel %vm1812, %v1795, %v1152
      %v1830 = vsel %vm1812, %v1797, %v1154
      %v1832 = vsel %vm1812, %v1799, %v1156
      %v1834 = vsel %vm1812, %v1801, %v1158
      %v1836 = vsel %vm1812, %v1803, %v1160
      %v1838 = vsel %vm1812, %v1805, %v1162
      %v1840 = vsel %vm1812, %v1807, %v1164
      %v1842 = vsel %vm1812, %v1809, %v1166
      %v1844 = vsel %vm1812, %v1811, %v1168
      %vm1845 = vcmask 162816
      %v1847 = vsel %vm1845, %v1814, %v1218
      %v1849 = vsel %vm1845, %v1816, %v1220
      %v1851 = vsel %vm1845, %v1818, %v1222
      %v1853 = vsel %vm1845, %v1820, %v1224
      %v1855 = vsel %vm1845, %v1822, %v1226
      %v1857 = vsel %vm1845, %v1824, %v1228
      %v1859 = vsel %vm1845, %v1826, %v1230
      %v1861 = vsel %vm1845, %v1828, %v1232
      %v1863 = vsel %vm1845, %v1830, %v1234
      %v1865 = vsel %vm1845, %v1832, %v1236
      %v1867 = vsel %vm1845, %v1834, %v1238
      %v1869 = vsel %vm1845, %v1836, %v1240
      %v1871 = vsel %vm1845, %v1838, %v1242
      %v1873 = vsel %vm1845, %v1840, %v1244
      %v1875 = vsel %vm1845, %v1842, %v1246
      %v1877 = vsel %vm1845, %v1844, %v1248
      %vm1878 = vcmask 195584
      %v1880 = vsel %vm1878, %v1847, %v1330
      %v1882 = vsel %vm1878, %v1849, %v1332
      %v1884 = vsel %vm1878, %v1851, %v1334
      %v1886 = vsel %vm1878, %v1853, %v1336
      %v1888 = vsel %vm1878, %v1855, %v1338
      %v1890 = vsel %vm1878, %v1857, %v1340
      %v1892 = vsel %vm1878, %v1859, %v1342
      %v1894 = vsel %vm1878, %v1861, %v1344
      %v1896 = vsel %vm1878, %v1863, %v1346
      %v1898 = vsel %vm1878, %v1865, %v1348
      %v1900 = vsel %vm1878, %v1867, %v1350
      %v1902 = vsel %vm1878, %v1869, %v1352
      %v1904 = vsel %vm1878, %v1871, %v1354
      %v1906 = vsel %vm1878, %v1873, %v1356
      %v1908 = vsel %vm1878, %v1875, %v1358
      %v1910 = vsel %vm1878, %v1877, %v1360
      %vm1911 = vcmask 228352
      %v1913 = vsel %vm1911, %v1880, %v1602
      %v1915 = vsel %vm1911, %v1882, %v1604
      %v1917 = vsel %vm1911, %v1884, %v1606
      %v1919 = vsel %vm1911, %v1886, %v1608
      %v1921 = vsel %vm1911, %v1888, %v1610
      %v1923 = vsel %vm1911, %v1890, %v1612
      %v1925 = vsel %vm1911, %v1892, %v1614
      %v1927 = vsel %vm1911, %v1894, %v1616
      %v1929 = vsel %vm1911, %v1896, %v1618
      %v1931 = vsel %vm1911, %v1898, %v1620
      %v1933 = vsel %vm1911, %v1900, %v1622
      %v1935 = vsel %vm1911, %v1902, %v1624
      %v1937 = vsel %vm1911, %v1904, %v1626
      %v1939 = vsel %vm1911, %v1906, %v1628
      %v1941 = vsel %vm1911, %v1908, %v1630
      %v1943 = vsel %vm1911, %v1910, %v1632
      %vm1944 = vcmask 261120
      %v1946 = vsel %vm1944, %v1913, %v1682
      %v1948 = vsel %vm1944, %v1915, %v1684
      %v1950 = vsel %vm1944, %v1917, %v1686
      %v1952 = vsel %vm1944, %v1919, %v1688
      %v1954 = vsel %vm1944, %v1921, %v1690
      %v1956 = vsel %vm1944, %v1923, %v1692
      %v1958 = vsel %vm1944, %v1925, %v1694
      %v1960 = vsel %vm1944, %v1927, %v1696
      %v1962 = vsel %vm1944, %v1929, %v1698
      %v1964 = vsel %vm1944, %v1931, %v1700
      %v1966 = vsel %vm1944, %v1933, %v1702
      %v1968 = vsel %vm1944, %v1935, %v1704
      %v1970 = vsel %vm1944, %v1937, %v1706
      %v1972 = vsel %vm1944, %v1939, %v1708
      %v1974 = vsel %vm1944, %v1941, %v1710
      %v1976 = vsel %vm1944, %v1943, %v1712
      %v1977 = vld [vmem:[%s1] sm:$0xf]
      %v1978 = vld [vmem:[%s1 + $0x4] sm:$0xf]
      %v1979 = vld [vmem:[%s1 + $0x8] sm:$0xf]
      %v1980 = vld [vmem:[%s1 + $0xc] sm:$0xf]
      %v1981 = vld [vmem:[%s1 + $0x10] sm:$0x3]
      %v1982 = vld [vmem:[%s2] sm:$0x1]
      %v1984 = vperm.slane %v1982, 0
      %v1991 = vunpack.c.l.b16 %v1977
      %v1992 = vunpack.c.l.b16 %v1978
      %v1993 = vunpack.c.l.b16 %v1979
      %v1994 = vunpack.c.l.b16 %v1980
      %v1995 = vunpack.c.l.b16 %v1981
      %v1996 = vpack.c.b16 %v1992, %v1991
      %v1997 = vpack.c.b16 %v1994, %v1993
      %v1998 = vpack.c.b16 %v1995, %v1995
      %vm2001 = vcmask 293888
      %v2002 = vsel %vm2001, %v1946, 0
      %v2004 = vsel %vm2001, %v1948, 0
      %v2006 = vsel %vm2001, %v1950, 0
      %v2008 = vsel %vm2001, %v1952, 0
      %v2010 = vsel %vm2001, %v1954, 0
      %v2012 = vsel %vm2001, %v1956, 0
      %v2014 = vsel %vm2001, %v1958, 0
      %v2016 = vsel %vm2001, %v1960, 0
      %v2018 = vsel %vm2001, %v1962, 0
      %v2020 = vsel %vm2001, %v1964, 0
      %v2022 = vsel %vm2001, %v1966, 0
      %v2024 = vsel %vm2001, %v1968, 0
      %v2026 = vsel %vm2001, %v1970, 0
      %v2028 = vsel %vm2001, %v1972, 0
      %v2030 = vsel %vm2001, %v1974, 0
      %v2032 = vsel %vm2001, %v1976, 0
      %vm2034 = vcmask 1041408
      %v2036 = vsel %vm2034, %v1998, 0
      %2038 = vmatpush.bf16.msra.mxu0 0
      %2039 = vmatpush.bf16.msra.mxu0 0
      %2040 = vmatpush.bf16.msra.mxu0 0
      %2041 = vmatpush.bf16.msra.mxu0 0
      %2042 = vmatpush.bf16.msra.mxu0 0
      %2043 = vmatpush.bf16.msra.mxu0 %v2036
      %2044 = vmatpush.bf16.msra.mxu0 %v1997
      %2045 = vmatpush.bf16.msra.mxu0 %v1996
      %2046 = vmatmul.bf16.gmra.mxu0 %v2002
      %v2047 = vpop.f32.mrf.mxu0
      %v2048 = vadd.f32 %v1984, %v2047
      %v2049 = vpop.f32.mrf.mxu0
      %v2050 = vadd.f32 %v1984, %v2049
      %2051 = vmatmul.bf16.gmra.mxu0 %v2004
      %v2052 = vpop.f32.mrf.mxu0
      %v2053 = vadd.f32 %v1984, %v2052
      %v2054 = vpop.f32.mrf.mxu0
      %v2055 = vadd.f32 %v1984, %v2054
      %2056 = vmatmul.bf16.gmra.mxu0 %v2006
      %v2057 = vpop.f32.mrf.mxu0
      %v2058 = vadd.f32 %v1984, %v2057
      %v2059 = vpop.f32.mrf.mxu0
      %v2060 = vadd.f32 %v1984, %v2059
      %2061 = vmatmul.bf16.gmra.mxu0 %v2008
      %v2062 = vpop.f32.mrf.mxu0
      %v2063 = vadd.f32 %v1984, %v2062
      %v2064 = vpop.f32.mrf.mxu0
      %v2065 = vadd.f32 %v1984, %v2064
      %2066 = vmatmul.bf16.gmra.mxu0 %v2010
      %v2067 = vpop.f32.mrf.mxu0
      %v2068 = vadd.f32 %v1984, %v2067
      %v2069 = vpop.f32.mrf.mxu0
      %v2070 = vadd.f32 %v1984, %v2069
      %2071 = vmatmul.bf16.gmra.mxu0 %v2012
      %v2072 = vpop.f32.mrf.mxu0
      %v2073 = vadd.f32 %v1984, %v2072
      %v2074 = vpop.f32.mrf.mxu0
      %v2075 = vadd.f32 %v1984, %v2074
      %2076 = vmatmul.bf16.gmra.mxu0 %v2014
      %v2077 = vpop.f32.mrf.mxu0
      %v2078 = vadd.f32 %v1984, %v2077
      %v2079 = vpop.f32.mrf.mxu0
      %v2080 = vadd.f32 %v1984, %v2079
      %2081 = vmatmul.bf16.gmra.mxu0 %v2016
      %v2082 = vpop.f32.mrf.mxu0
      %v2083 = vadd.f32 %v1984, %v2082
      %v2084 = vpop.f32.mrf.mxu0
      %v2085 = vadd.f32 %v1984, %v2084
      %2086 = vmatmul.bf16.gmra.mxu0 %v2018
      %v2087 = vpop.f32.mrf.mxu0
      %v2088 = vadd.f32 %v1984, %v2087
      %v2089 = vpop.f32.mrf.mxu0
      %v2090 = vadd.f32 %v1984, %v2089
      %2091 = vmatmul.bf16.gmra.mxu0 %v2020
      %v2092 = vpop.f32.mrf.mxu0
      %v2093 = vadd.f32 %v1984, %v2092
      %v2094 = vpop.f32.mrf.mxu0
      %v2095 = vadd.f32 %v1984, %v2094
      %2096 = vmatmul.bf16.gmra.mxu0 %v2022
      %v2097 = vpop.f32.mrf.mxu0
      %v2098 = vadd.f32 %v1984, %v2097
      %v2099 = vpop.f32.mrf.mxu0
      %v2100 = vadd.f32 %v1984, %v2099
      %2101 = vmatmul.bf16.gmra.mxu0 %v2024
      %v2102 = vpop.f32.mrf.mxu0
      %v2103 = vadd.f32 %v1984, %v2102
      %v2104 = vpop.f32.mrf.mxu0
      %v2105 = vadd.f32 %v1984, %v2104
      %2106 = vmatmul.bf16.gmra.mxu0 %v2026
      %v2107 = vpop.f32.mrf.mxu0
      %v2108 = vadd.f32 %v1984, %v2107
      %v2109 = vpop.f32.mrf.mxu0
      %v2110 = vadd.f32 %v1984, %v2109
      %2111 = vmatmul.bf16.gmra.mxu0 %v2028
      %v2112 = vpop.f32.mrf.mxu0
      %v2113 = vadd.f32 %v1984, %v2112
      %v2114 = vpop.f32.mrf.mxu0
      %v2115 = vadd.f32 %v1984, %v2114
      %2116 = vmatmul.bf16.gmra.mxu0 %v2030
      %v2117 = vpop.f32.mrf.mxu0
      %v2118 = vadd.f32 %v1984, %v2117
      %v2119 = vpop.f32.mrf.mxu0
      %v2120 = vadd.f32 %v1984, %v2119
      %2121 = vmatmul.bf16.gmra.mxu0 %v2032
      %v2122 = vpop.f32.mrf.mxu0
      %v2123 = vadd.f32 %v1984, %v2122
      %v2124 = vpop.f32.mrf.mxu0
      %v2125 = vadd.f32 %v1984, %v2124
      %2126 = vdwg.mxu0
      %v2127 = vmax.f32 %v2048, 0.0
      %v2128 = vmax.f32 %v2050, 0.0
      %v2129 = vmax.f32 %v2053, 0.0
      %v2130 = vmax.f32 %v2055, 0.0
      %v2131 = vmax.f32 %v2058, 0.0
      %v2132 = vmax.f32 %v2060, 0.0
      %v2133 = vmax.f32 %v2063, 0.0
      %v2134 = vmax.f32 %v2065, 0.0
      %v2135 = vmax.f32 %v2068, 0.0
      %v2136 = vmax.f32 %v2070, 0.0
      %v2137 = vmax.f32 %v2073, 0.0
      %v2138 = vmax.f32 %v2075, 0.0
      %v2139 = vmax.f32 %v2078, 0.0
      %v2140 = vmax.f32 %v2080, 0.0
      %v2141 = vmax.f32 %v2083, 0.0
      %v2142 = vmax.f32 %v2085, 0.0
      %v2143 = vmax.f32 %v2088, 0.0
      %v2144 = vmax.f32 %v2090, 0.0
      %v2145 = vmax.f32 %v2093, 0.0
      %v2146 = vmax.f32 %v2095, 0.0
      %v2147 = vmax.f32 %v2098, 0.0
      %v2148 = vmax.f32 %v2100, 0.0
      %v2149 = vmax.f32 %v2103, 0.0
      %v2150 = vmax.f32 %v2105, 0.0
      %v2151 = vmax.f32 %v2108, 0.0
      %v2152 = vmax.f32 %v2110, 0.0
      %v2153 = vmax.f32 %v2113, 0.0
      %v2154 = vmax.f32 %v2115, 0.0
      %v2155 = vmax.f32 %v2118, 0.0
      %v2156 = vmax.f32 %v2120, 0.0
      %v2157 = vmax.f32 %v2123, 0.0
      %v2158 = vmax.f32 %v2125, 0.0
      %v2159 = vpack.c.bf16 %v2127, %v2127
      %v2160 = vpack.c.bf16 %v2128, %v2128
      %v2161 = vpack.c.bf16 %v2129, %v2129
      %v2162 = vpack.c.bf16 %v2130, %v2130
      %v2163 = vpack.c.bf16 %v2131, %v2131
      %v2164 = vpack.c.bf16 %v2132, %v2132
      %v2165 = vpack.c.bf16 %v2133, %v2133
      %v2166 = vpack.c.bf16 %v2134, %v2134
      %v2167 = vpack.c.bf16 %v2135, %v2135
      %v2168 = vpack.c.bf16 %v2136, %v2136
      %v2169 = vpack.c.bf16 %v2137, %v2137
      %v2170 = vpack.c.bf16 %v2138, %v2138
      %v2171 = vpack.c.bf16 %v2139, %v2139
      %v2172 = vpack.c.bf16 %v2140, %v2140
      %v2173 = vpack.c.bf16 %v2141, %v2141
      %v2174 = vpack.c.bf16 %v2142, %v2142
      %v2175 = vpack.c.bf16 %v2143, %v2143
      %v2176 = vpack.c.bf16 %v2144, %v2144
      %v2177 = vpack.c.bf16 %v2145, %v2145
      %v2178 = vpack.c.bf16 %v2146, %v2146
      %v2179 = vpack.c.bf16 %v2147, %v2147
      %v2180 = vpack.c.bf16 %v2148, %v2148
      %v2181 = vpack.c.bf16 %v2149, %v2149
      %v2182 = vpack.c.bf16 %v2150, %v2150
      %v2183 = vpack.c.bf16 %v2151, %v2151
      %v2184 = vpack.c.bf16 %v2152, %v2152
      %v2185 = vpack.c.bf16 %v2153, %v2153
      %v2186 = vpack.c.bf16 %v2154, %v2154
      %v2187 = vpack.c.bf16 %v2155, %v2155
      %v2188 = vpack.c.bf16 %v2156, %v2156
      %v2189 = vpack.c.bf16 %v2157, %v2157
      %v2190 = vpack.c.bf16 %v2158, %v2158
      %2191 = vst [vmem:[%s192] sm:$0xf] %v2159
      %2192 = vst [vmem:[%s192 + $0x4] sm:$0xf] %v2160
      %2193 = vst [vmem:[%s192 + $0x8] sm:$0xf] %v2161
      %2194 = vst [vmem:[%s192 + $0xc] sm:$0xf] %v2162
      %2195 = vst [vmem:[%s192 + $0x10] sm:$0xf] %v2163
      %2196 = vst [vmem:[%s192 + $0x14] sm:$0xf] %v2164
      %2197 = vst [vmem:[%s192 + $0x18] sm:$0xf] %v2165
      %2198 = vst [vmem:[%s192 + $0x1c] sm:$0xf] %v2166
      %2199 = vst [vmem:[%s192 + $0x20] sm:$0xf] %v2167
      %2200 = vst [vmem:[%s192 + $0x24] sm:$0xf] %v2168
      %2201 = vst [vmem:[%s192 + $0x28] sm:$0xf] %v2169
      %2202 = vst [vmem:[%s192 + $0x2c] sm:$0xf] %v2170
      %2203 = vst [vmem:[%s192 + $0x30] sm:$0xf] %v2171
      %2204 = vst [vmem:[%s192 + $0x34] sm:$0xf] %v2172
      %2205 = vst [vmem:[%s192 + $0x38] sm:$0xf] %v2173
      %2206 = vst [vmem:[%s192 + $0x3c] sm:$0xf] %v2174
      %2207 = vst [vmem:[%s192 + $0x40] sm:$0xf] %v2175
      %2208 = vst [vmem:[%s192 + $0x44] sm:$0xf] %v2176
      %2209 = vst [vmem:[%s192 + $0x48] sm:$0xf] %v2177
      %2210 = vst [vmem:[%s192 + $0x4c] sm:$0xf] %v2178
      %2211 = vst [vmem:[%s192 + $0x50] sm:$0xf] %v2179
      %2212 = vst [vmem:[%s192 + $0x54] sm:$0xf] %v2180
      %2213 = vst [vmem:[%s192 + $0x58] sm:$0xf] %v2181
      %2214 = vst [vmem:[%s192 + $0x5c] sm:$0xf] %v2182
      %2215 = vst [vmem:[%s192 + $0x60] sm:$0xf] %v2183
      %2216 = vst [vmem:[%s192 + $0x64] sm:$0xf] %v2184
      %2217 = vst [vmem:[%s192 + $0x68] sm:$0xf] %v2185
      %2218 = vst [vmem:[%s192 + $0x6c] sm:$0xf] %v2186
      %2219 = vst [vmem:[%s192 + $0x70] sm:$0xf] %v2187
      %2220 = vst [vmem:[%s192 + $0x74] sm:$0xf] %v2188
      %2221 = vst [vmem:[%s192 + $0x78] sm:$0xf] %v2189
      %2222 = vst [vmem:[%s192 + $0x7c] sm:$0xf] %v2190
      %s2223 = smul.u32 32, %s19
      %p2224 = scmp.lt.s32.totalorder %s18, 1
      %s2225 = scalar_select %p2224, %s18, 1
      %p2226 = scmp.lt.s32.totalorder %s2223, 31
      %s2227 = scalar_select %p2226, %s2223, 31
      %s2228 = smul.addr %s2225, 32
      %s2229 = sadd.s32 %s2227, %s2228
      %s2230 = smul.addr %s2229, 4
      %s2231 = scalar_lea.vmem %s3, %s2230
      // Predicated region
      $region33: #{conv_bn_act.1} parent=31 // pred_check
        %p2232 = pneg %p114
      $region34: #{conv_bn_act.1} parent=31 // pred_check_branch
        %2234 = sbr.rel (%p2232) target = $region36
      $region35: #{conv_bn_act.1} parent=31 // pred_region
        %s2235 = smul.u32 32, %s19
      $region36: #{conv_bn_act.1} parent=31 // pred_fallthru
        _
    $region32: #{conv_bn_act.1} parent=5 // pred_fallthru
      _
    %p2236 = scmp.le.s32.totalorder 2, %s9
    // Predicated region
    $region37: #{conv_bn_act.1} parent=5 // pred_check
      %p2237 = pneg %p2236
    $region38: #{conv_bn_act.1} parent=5 // pred_check_branch
      %2239 = sbr.rel (%p2237) target = $region40
    $region39: #{conv_bn_act.1} parent=5 // pred_region
      %s2240 = ssub.s32 %s9, 2
      // Predicated region
      $region41: #{conv_bn_act.1} parent=39 // pred_check
        %p2241 = pneg %p120
      $region42: #{conv_bn_act.1} parent=39 // pred_check_branch
        %2243 = sbr.rel (%p2241) target = $region44
      $region43: #{conv_bn_act.1} parent=39 // pred_region
        %s2244 = smul.u32 32, %s21
        %p2245 = scmp.lt.s32.totalorder %s20, 1
        %s2246 = scalar_select %p2245, %s20, 1
        %p2247 = scmp.lt.s32.totalorder %s2244, 31
        %s2248 = scalar_select %p2247, %s2244, 31
        %s2249 = smul.addr %s2246, 32
        %s2250 = sadd.s32 %s2248, %s2249
        %s2251 = smul.addr %s2250, 4
        %s2252 = scalar_lea.vmem %s3, %s2251
      $region44: #{conv_bn_act.1} parent=39 // pred_fallthru
        _
    $region40: #{conv_bn_act.1} parent=5 // pred_fallthru
      _
  $region6: #{conv_bn_act.1} parent=0 // loop_footer
    %s13 = sadd.s32 1, %s9
  $region7: #{conv_bn_act.1} parent=0 // loop_footer_branch
    %8 = sbr.rel target = $region3
  $region8: #{conv_bn_act.1} parent=0 // loop_exit
    _

</llo_original>
